<compile_context>
chip_gen: v7x
topology: tpu7x:2x2x1
jax: 0.10.0
libtpu: 0.0.40
codegen_flags: <defaults>
</compile_context>

<pallas_src>
import jax
import jax.numpy as jnp
from jax.experimental import pallas as pl
from jax.experimental.pallas import tpu as pltpu

ANZ_INPUT = 7
ANZ_OUTPUT = 2
HIDDEN = (512, 256, 128)
OUT_PAD = 128              # lane-dense output slab; real outputs in [:, :ANZ_OUTPUT]
NEG_SLOPE = 0.01           # PyTorch nn.LeakyReLU default


def _round_up(n, m):
    return ((n + m - 1) // m) * m


def _leaky_relu(x):
    # max(x, 0.01*x) == LeakyReLU(0.01) for slope < 1 (single VPU max vs cmp+select).
    return jnp.maximum(x, NEG_SLOPE * x)


def mlp_kernel(x_ref,
               w1_ref, b1_ref,
               w2_ref, b2_ref,
               w3_ref, b3_ref,
               w4_ref, b4_ref,
               o_ref):
    # x arrives f32 straight from HBM; cast to bf16 here so the wrapper does
    # not pay a separate full read+write XLA pass for the cast.
    x = x_ref[...].astype(jnp.bfloat16)

    h = jnp.dot(x, w1_ref[...], preferred_element_type=jnp.float32)
    h = _leaky_relu(h + b1_ref[0, :]).astype(jnp.bfloat16)

    h = jnp.dot(h, w2_ref[...], preferred_element_type=jnp.float32)
    h = _leaky_relu(h + b2_ref[0, :]).astype(jnp.bfloat16)

    h = jnp.dot(h, w3_ref[...], preferred_element_type=jnp.float32)
    h = _leaky_relu(h + b3_ref[0, :]).astype(jnp.bfloat16)

    out = jnp.dot(h, w4_ref[...], preferred_element_type=jnp.float32) + b4_ref[0, :]
    o_ref[...] = out.astype(o_ref.dtype)   # bf16 slab: halves HBM writeback


def prepare_params(params):
    """One-time param prep: pad the last layer to a lane-dense OUT_PAD-wide slab.

    Hoisted out of net_forward so the zero-pad is not re-materialized per call.
    """
    (w1, b1), (w2, b2), (w3, b3), (w4, b4) = params
    w4p = jnp.zeros((w4.shape[0], OUT_PAD), w4.dtype).at[:, :ANZ_OUTPUT].set(w4)
    b4p = jnp.zeros((1, OUT_PAD), b4.dtype).at[:, :ANZ_OUTPUT].set(b4)
    return [(w1, b1), (w2, b2), (w3, b3), (w4p, b4p)]


def net_forward(x, prepped_params, *, tile_b=1024, single_block_max=2048):
    """x: [B, ANZ_INPUT] f32.  prepped_params: output of prepare_params (bf16, [in,out])."""
    B = x.shape[0]
    (w1, b1), (w2, b2), (w3, b3), (w4p, b4p) = prepped_params

    if B <= single_block_max:
        # Small batch: single block -> no grid-step overhead, minimal row padding.
        tile = _round_up(max(B, 16), 16)
    else:
        # Large batch: big tiles amortize the ~0.35us/step overhead; keep a
        # multiple of 16 for bf16 sublane packing.  tile_b ~1024 stays well
        # inside every generation's VMEM (v7x: 64 MiB physical).
        tile = _round_up(tile_b, 16)

    n_blocks = pl.cdiv(B, tile)
    b_pad = n_blocks * tile

    x_p = x
    if b_pad != B:
        x_p = jnp.pad(x, ((0, b_pad - B), (0, 0)))

    # Weights/biases: full-array blocks with constant index_map -> VMEM-resident across the grid.
    const = lambda a: pl.BlockSpec(a.shape, lambda i: (0,) * a.ndim)

    out = pl.pallas_call(
        mlp_kernel,
        out_shape=jax.ShapeDtypeStruct((b_pad, OUT_PAD), jnp.bfloat16),
        grid=(n_blocks,),
        in_specs=[pl.BlockSpec((tile, ANZ_INPUT), lambda i: (i, 0)),
                  const(w1), const(b1),
                  const(w2), const(b2),
                  const(w3), const(b3),
                  const(w4p), const(b4p)],
        out_specs=pl.BlockSpec((tile, OUT_PAD), lambda i: (i, 0)),
        compiler_params=pltpu.CompilerParams(
            dimension_semantics=("parallel",)),
    )(x_p, w1, b1, w2, b2, w3, b3, w4p, b4p)

    return out[:B, :ANZ_OUTPUT].astype(jnp.float32)


def init_params(key):
    """Deterministic Kaiming-uniform-ish init matching nn.Linear shapes (stored [in,out], bf16)."""
    dims = (ANZ_INPUT,) + HIDDEN + (ANZ_OUTPUT,)
    params = []
    for i in range(len(dims) - 1):
        fan_in, fan_out = dims[i], dims[i + 1]
        key, kw, kb = jax.random.split(key, 3)
        bound = 1.0 / jnp.sqrt(fan_in)
        w = jax.random.uniform(kw, (fan_in, fan_out), jnp.float32, -bound, bound)
        b = jax.random.uniform(kb, (1, fan_out), jnp.float32, -bound, bound)
        params.append((w.astype(jnp.bfloat16), b.astype(jnp.bfloat16)))
    return params


def reference_forward(x, params):
    """Pure-JAX reference using the same bf16 params / f32 accumulation."""
    h = x.astype(jnp.bfloat16)
    n = len(params)
    for i, (w, b) in enumerate(params):
        h = jnp.dot(h, w, preferred_element_type=jnp.float32) + b[0, :]
        if i < n - 1:
            h = _leaky_relu(h).astype(jnp.bfloat16)
    return h


if __name__ == "__main__":
    key = jax.random.PRNGKey(0)
    kx, kp = jax.random.split(key)

    # B not a multiple of 16 on purpose: exercises batch padding.
    B = 300
    x = jax.random.normal(kx, (B, ANZ_INPUT), jnp.float32)
    params = init_params(kp)
    prepped = prepare_params(params)
    ref = reference_forward(x, params)

    # 1) Single-block path (small-batch / latency case).
    out_single = jax.block_until_ready(net_forward(x, prepped))
    assert out_single.shape == (B, ANZ_OUTPUT)
    assert jnp.allclose(out_single, ref, atol=2e-2, rtol=2e-2)

    # 2) Multi-block grid path (large-batch case), forced here with a small tile.
    out_grid = jax.block_until_ready(
        net_forward(x, prepped, tile_b=128, single_block_max=0))
    assert out_grid.shape == (B, ANZ_OUTPUT)
    assert jnp.allclose(out_grid, ref, atol=2e-2, rtol=2e-2)

    print("KERNEL_OK")
</pallas_src>

<mosaic_0001>
module attributes {stable_mosaic.version = 11 : i64} {
  func.func @mlp_kernel(%arg0: i32, %arg1: memref<304x7xf32, #tpu.memory_space<vmem>>, %arg2: memref<7x512xbf16, #tpu.memory_space<vmem>>, %arg3: memref<1x512xbf16, #tpu.memory_space<vmem>>, %arg4: memref<512x256xbf16, #tpu.memory_space<vmem>>, %arg5: memref<1x256xbf16, #tpu.memory_space<vmem>>, %arg6: memref<256x128xbf16, #tpu.memory_space<vmem>>, %arg7: memref<1x128xbf16, #tpu.memory_space<vmem>>, %arg8: memref<128x128xbf16, #tpu.memory_space<vmem>>, %arg9: memref<1x128xbf16, #tpu.memory_space<vmem>>, %arg10: memref<304x128xbf16, #tpu.memory_space<vmem>>) attributes {dimension_semantics = [#tpu.dimension_semantics<parallel>], iteration_bounds = array<i64: 1>, scalar_prefetch = 0 : i64, scratch_operands = 0 : i64, tpu.core_type = #tpu.core_type<tc>, window_params = [{transform_indices = @transform_0, window_bounds = array<i64: 304, 7>}, {pipeline_mode = #tpu.pipeline_mode<synchronous>, transform_indices = @transform_1, window_bounds = array<i64: 7, 512>}, {pipeline_mode = #tpu.pipeline_mode<synchronous>, transform_indices = @transform_2, window_bounds = array<i64: 1, 512>}, {pipeline_mode = #tpu.pipeline_mode<synchronous>, transform_indices = @transform_3, window_bounds = array<i64: 512, 256>}, {pipeline_mode = #tpu.pipeline_mode<synchronous>, transform_indices = @transform_4, window_bounds = array<i64: 1, 256>}, {pipeline_mode = #tpu.pipeline_mode<synchronous>, transform_indices = @transform_5, window_bounds = array<i64: 256, 128>}, {pipeline_mode = #tpu.pipeline_mode<synchronous>, transform_indices = @transform_6, window_bounds = array<i64: 1, 128>}, {pipeline_mode = #tpu.pipeline_mode<synchronous>, transform_indices = @transform_7, window_bounds = array<i64: 128, 128>}, {pipeline_mode = #tpu.pipeline_mode<synchronous>, transform_indices = @transform_8, window_bounds = array<i64: 1, 128>}, {transform_indices = @transform_9, window_bounds = array<i64: 304, 128>}]} {
    %c0 = arith.constant 0 : index
    %c0_0 = arith.constant 0 : index
    %0 = vector.load %arg1[%c0, %c0_0] : memref<304x7xf32, #tpu.memory_space<vmem>>, vector<304x7xf32>
    %1 = arith.truncf %0 : vector<304x7xf32> to vector<304x7xbf16>
    %c0_1 = arith.constant 0 : index
    %c0_2 = arith.constant 0 : index
    %2 = vector.load %arg2[%c0_1, %c0_2] : memref<7x512xbf16, #tpu.memory_space<vmem>>, vector<7x512xbf16>
    %cst = arith.constant dense<0.000000e+00> : vector<304x512xf32>
    %3 = tpu.matmul %1, %2, %cst {dimension_numbers = #tpu.dot_dimension_numbers<[1], [0], [0], [1], [0, 0, 1, 1], [], []>} : vector<304x7xbf16>, vector<7x512xbf16>, vector<304x512xf32> -> vector<304x512xf32>
    %c0_3 = arith.constant 0 : index
    %c0_4 = arith.constant 0 : index
    %4 = vector.load %arg3[%c0_3, %c0_4] : memref<1x512xbf16, #tpu.memory_space<vmem>>, vector<1x512xbf16>
    %5 = vector.shape_cast %4 : vector<1x512xbf16> to vector<512xbf16>
    %6 = arith.extf %5 : vector<512xbf16> to vector<512xf32>
    %7 = vector.shape_cast %6 : vector<512xf32> to vector<1x512xf32>
    %8 = vector.broadcast %7 : vector<1x512xf32> to vector<304x512xf32>
    %9 = arith.addf %3, %8 : vector<304x512xf32>
    %cst_5 = arith.constant 0.00999999977 : f32
    %10 = vector.broadcast %cst_5 : f32 to vector<304x512xf32>
    %11 = arith.mulf %10, %9 : vector<304x512xf32>
    %12 = arith.maximumf %9, %11 : vector<304x512xf32>
    %13 = arith.truncf %12 : vector<304x512xf32> to vector<304x512xbf16>
    %c0_6 = arith.constant 0 : index
    %c0_7 = arith.constant 0 : index
    %14 = vector.load %arg4[%c0_6, %c0_7] : memref<512x256xbf16, #tpu.memory_space<vmem>>, vector<512x256xbf16>
    %cst_8 = arith.constant dense<0.000000e+00> : vector<304x256xf32>
    %15 = tpu.matmul %13, %14, %cst_8 {dimension_numbers = #tpu.dot_dimension_numbers<[1], [0], [0], [1], [0, 0, 1, 1], [], []>} : vector<304x512xbf16>, vector<512x256xbf16>, vector<304x256xf32> -> vector<304x256xf32>
    %c0_9 = arith.constant 0 : index
    %c0_10 = arith.constant 0 : index
    %16 = vector.load %arg5[%c0_9, %c0_10] : memref<1x256xbf16, #tpu.memory_space<vmem>>, vector<1x256xbf16>
    %17 = vector.shape_cast %16 : vector<1x256xbf16> to vector<256xbf16>
    %18 = arith.extf %17 : vector<256xbf16> to vector<256xf32>
    %19 = vector.shape_cast %18 : vector<256xf32> to vector<1x256xf32>
    %20 = vector.broadcast %19 : vector<1x256xf32> to vector<304x256xf32>
    %21 = arith.addf %15, %20 : vector<304x256xf32>
    %cst_11 = arith.constant 0.00999999977 : f32
    %22 = vector.broadcast %cst_11 : f32 to vector<304x256xf32>
    %23 = arith.mulf %22, %21 : vector<304x256xf32>
    %24 = arith.maximumf %21, %23 : vector<304x256xf32>
    %25 = arith.truncf %24 : vector<304x256xf32> to vector<304x256xbf16>
    %c0_12 = arith.constant 0 : index
    %c0_13 = arith.constant 0 : index
    %26 = vector.load %arg6[%c0_12, %c0_13] : memref<256x128xbf16, #tpu.memory_space<vmem>>, vector<256x128xbf16>
    %cst_14 = arith.constant dense<0.000000e+00> : vector<304x128xf32>
    %27 = tpu.matmul %25, %26, %cst_14 {dimension_numbers = #tpu.dot_dimension_numbers<[1], [0], [0], [1], [0, 0, 1, 1], [], []>} : vector<304x256xbf16>, vector<256x128xbf16>, vector<304x128xf32> -> vector<304x128xf32>
    %c0_15 = arith.constant 0 : index
    %c0_16 = arith.constant 0 : index
    %28 = vector.load %arg7[%c0_15, %c0_16] : memref<1x128xbf16, #tpu.memory_space<vmem>>, vector<1x128xbf16>
    %29 = vector.shape_cast %28 : vector<1x128xbf16> to vector<128xbf16>
    %30 = arith.extf %29 : vector<128xbf16> to vector<128xf32>
    %31 = vector.shape_cast %30 : vector<128xf32> to vector<1x128xf32>
    %32 = vector.broadcast %31 : vector<1x128xf32> to vector<304x128xf32>
    %33 = arith.addf %27, %32 : vector<304x128xf32>
    %cst_17 = arith.constant 0.00999999977 : f32
    %34 = vector.broadcast %cst_17 : f32 to vector<304x128xf32>
    %35 = arith.mulf %34, %33 : vector<304x128xf32>
    %36 = arith.maximumf %33, %35 : vector<304x128xf32>
    %37 = arith.truncf %36 : vector<304x128xf32> to vector<304x128xbf16>
    %c0_18 = arith.constant 0 : index
    %c0_19 = arith.constant 0 : index
    %38 = vector.load %arg8[%c0_18, %c0_19] : memref<128x128xbf16, #tpu.memory_space<vmem>>, vector<128x128xbf16>
    %cst_20 = arith.constant dense<0.000000e+00> : vector<304x128xf32>
    %39 = tpu.matmul %37, %38, %cst_20 {dimension_numbers = #tpu.dot_dimension_numbers<[1], [0], [0], [1], [0, 0, 1, 1], [], []>} : vector<304x128xbf16>, vector<128x128xbf16>, vector<304x128xf32> -> vector<304x128xf32>
    %c0_21 = arith.constant 0 : index
    %c0_22 = arith.constant 0 : index
    %40 = vector.load %arg9[%c0_21, %c0_22] : memref<1x128xbf16, #tpu.memory_space<vmem>>, vector<1x128xbf16>
    %41 = vector.shape_cast %40 : vector<1x128xbf16> to vector<128xbf16>
    %42 = arith.extf %41 : vector<128xbf16> to vector<128xf32>
    %43 = vector.shape_cast %42 : vector<128xf32> to vector<1x128xf32>
    %44 = vector.broadcast %43 : vector<1x128xf32> to vector<304x128xf32>
    %45 = arith.addf %39, %44 : vector<304x128xf32>
    %46 = arith.truncf %45 : vector<304x128xf32> to vector<304x128xbf16>
    %c0_23 = arith.constant 0 : index
    %c0_24 = arith.constant 0 : index
    %47 = vector.load %arg10[%c0_23, %c0_24] : memref<304x128xbf16, #tpu.memory_space<vmem>>, vector<304x128xbf16>
    tpu.vector_store %arg10[%c0_23, %c0_24], %46 {strides = array<i32>} : memref<304x128xbf16, #tpu.memory_space<vmem>>, vector<304x128xbf16>,
    return
  }
  func.func @transform_0(%arg0: i32) -> (i32, i32) {
    %c0_i32 = arith.constant 0 : i32
    %c0_i32_0 = arith.constant 0 : i32
    return %arg0, %c0_i32 : i32, i32
  }
  func.func @transform_1(%arg0: i32) -> (i32, i32) {
    %c0_i32 = arith.constant 0 : i32
    %c0_i32_0 = arith.constant 0 : i32
    %c0_i32_1 = arith.constant 0 : i32
    return %c0_i32, %c0_i32_0 : i32, i32
  }
  func.func @transform_2(%arg0: i32) -> (i32, i32) {
    %c0_i32 = arith.constant 0 : i32
    %c0_i32_0 = arith.constant 0 : i32
    %c0_i32_1 = arith.constant 0 : i32
    return %c0_i32, %c0_i32_0 : i32, i32
  }
  func.func @transform_3(%arg0: i32) -> (i32, i32) {
    %c0_i32 = arith.constant 0 : i32
    %c0_i32_0 = arith.constant 0 : i32
    %c0_i32_1 = arith.constant 0 : i32
    return %c0_i32, %c0_i32_0 : i32, i32
  }
  func.func @transform_4(%arg0: i32) -> (i32, i32) {
    %c0_i32 = arith.constant 0 : i32
    %c0_i32_0 = arith.constant 0 : i32
    %c0_i32_1 = arith.constant 0 : i32
    return %c0_i32, %c0_i32_0 : i32, i32
  }
  func.func @transform_5(%arg0: i32) -> (i32, i32) {
    %c0_i32 = arith.constant 0 : i32
    %c0_i32_0 = arith.constant 0 : i32
    %c0_i32_1 = arith.constant 0 : i32
    return %c0_i32, %c0_i32_0 : i32, i32
  }
  func.func @transform_6(%arg0: i32) -> (i32, i32) {
    %c0_i32 = arith.constant 0 : i32
    %c0_i32_0 = arith.constant 0 : i32
    %c0_i32_1 = arith.constant 0 : i32
    return %c0_i32, %c0_i32_0 : i32, i32
  }
  func.func @transform_7(%arg0: i32) -> (i32, i32) {
    %c0_i32 = arith.constant 0 : i32
    %c0_i32_0 = arith.constant 0 : i32
    %c0_i32_1 = arith.constant 0 : i32
    return %c0_i32, %c0_i32_0 : i32, i32
  }
  func.func @transform_8(%arg0: i32) -> (i32, i32) {
    %c0_i32 = arith.constant 0 : i32
    %c0_i32_0 = arith.constant 0 : i32
    %c0_i32_1 = arith.constant 0 : i32
    return %c0_i32, %c0_i32_0 : i32, i32
  }
  func.func @transform_9(%arg0: i32) -> (i32, i32) {
    %c0_i32 = arith.constant 0 : i32
    %c0_i32_0 = arith.constant 0 : i32
    return %arg0, %c0_i32 : i32, i32
  }
}

</mosaic_0001>

<llo_original>
// kernel: tpu_custom_call.1
$region0: #{tpu_custom_call.1}
  #allocation0 [shape = 'u32[]', space=smem, size = 0x4, offset = 0x4, fixed_abs, tag = 'smem constant byte address 0x4 - core index']
  #allocation1 [shape = 'u32[144,128]{1,0:T(1,128)}', space=vmem, size = 0x12000, scoped, tag = 'internal scratch']
  %s0 = inlined_call_operand.vmem [shape: f32[304,7], index: 0, kind: input, shape index: {}]
  %s1 = inlined_call_operand.vmem [shape: bf16[7,512], index: 1, kind: input, shape index: {}]
  %s2 = inlined_call_operand.vmem [shape: bf16[1,512], index: 2, kind: input, shape index: {}]
  %s3 = inlined_call_operand.hbm [shape: bf16[512,256], index: 3, kind: input, shape index: {}]
  %s4 = inlined_call_operand.vmem [shape: bf16[1,256], index: 4, kind: input, shape index: {}]
  %s5 = inlined_call_operand.vmem [shape: bf16[256,128], index: 5, kind: input, shape index: {}]
  %s6 = inlined_call_operand.vmem [shape: bf16[1,128], index: 6, kind: input, shape index: {}]
  %s7 = inlined_call_operand.vmem [shape: bf16[128,128], index: 7, kind: input, shape index: {}]
  %s8 = inlined_call_operand.vmem [shape: bf16[1,128], index: 8, kind: input, shape index: {}]
  %s9 = inlined_call_operand.hbm [shape: bf16[304,128], index: 9, kind: output, shape index: {}]
  %s10 = sld [smem:[#allocation0]]
  $region50: #{tpu_custom_call.1} parent=0
    _
  %s12 = ssub.s32 1, %s10
  %s13 = scalar_select 0, %s12, %s10
  $region1: #{tpu_custom_call.1} parent=0
    #allocation2 [shape = 'u8[262144]{0}', space=vmem, size = 0x40000, scoped, tag = 'input window, operand 3, single buffered']
    #allocation3 [shape = 's32[1]{0}', space=sflag, size = 0x4, scoped, tag = 'scoped memory for tpu_custom_call.1']
    #allocation4 [shape = 's32[1]{0}', space=sflag, size = 0x4, scoped, tag = 'scoped memory for tpu_custom_call.1']
    #allocation5 [shape = 'u8[77824]{0}', space=vmem, size = 0x13000, scoped, tag = 'output window, operand 0, single buffered']
    %14 = vsyncpa [#allocation3], 0
    %15 = vsyncpa [#allocation4], 0
    // Predicated region
    $region2: #{tpu_custom_call.1} parent=1 // pred_check
      _
    $region3: #{tpu_custom_call.1} parent=1 // pred_check_branch
      %17 = sbr.rel (0) target = $region5
    $region4: #{tpu_custom_call.1} parent=1 // pred_region
      _
    $region5: #{tpu_custom_call.1} parent=1 // pred_fallthru
      _
    // Predicated region
    $region6: #{tpu_custom_call.1} parent=1 // pred_check
      _
    $region7: #{tpu_custom_call.1} parent=1 // pred_check_branch
      %19 = sbr.rel (0) target = $region9
    $region8: #{tpu_custom_call.1} parent=1 // pred_region
      _
    $region9: #{tpu_custom_call.1} parent=1 // pred_fallthru
      _
    // Predicated region
    $region10: #{tpu_custom_call.1} parent=1 // pred_check
      _
    $region11: #{tpu_custom_call.1} parent=1 // pred_check_branch
      %21 = sbr.rel (0) target = $region13
    $region12: #{tpu_custom_call.1} parent=1 // pred_region
      _
    $region13: #{tpu_custom_call.1} parent=1 // pred_fallthru
      _
    // Predicated region
    $region14: #{tpu_custom_call.1} parent=1 // pred_check
      _
    $region15: #{tpu_custom_call.1} parent=1 // pred_check_branch
      %23 = sbr.rel (0) target = $region17
    $region16: #{tpu_custom_call.1} parent=1 // pred_region
      %s25 = ssub.s32 8192, 8192
      %26 = vsyncadd [#allocation3], %s25
      %s27 = sshll.u32 [#allocation2], 4
      %s28 = int_to_ptr.vmem [resolvable:$true] %s27
      %33 = dma.hbm_to_vmem [thread:$0]  %s3, 8192, %s28, [#allocation3], 128, 128, 8
    $region17: #{tpu_custom_call.1} parent=1 // pred_fallthru
      _
    // Predicated region
    $region18: #{tpu_custom_call.1} parent=1 // pred_check
      _
    $region19: #{tpu_custom_call.1} parent=1 // pred_check_branch
      %35 = sbr.rel (0) target = $region21
    $region20: #{tpu_custom_call.1} parent=1 // pred_region
      _
    $region21: #{tpu_custom_call.1} parent=1 // pred_fallthru
      _
    // Predicated region
    $region22: #{tpu_custom_call.1} parent=1 // pred_check
      _
    $region23: #{tpu_custom_call.1} parent=1 // pred_check_branch
      %37 = sbr.rel (0) target = $region25
    $region24: #{tpu_custom_call.1} parent=1 // pred_region
      _
    $region25: #{tpu_custom_call.1} parent=1 // pred_fallthru
      _
    // Predicated region
    $region26: #{tpu_custom_call.1} parent=1 // pred_check
      _
    $region27: #{tpu_custom_call.1} parent=1 // pred_check_branch
      %39 = sbr.rel (0) target = $region29
    $region28: #{tpu_custom_call.1} parent=1 // pred_region
      _
    $region29: #{tpu_custom_call.1} parent=1 // pred_fallthru
      _
    // Predicated region
    $region30: #{tpu_custom_call.1} parent=1 // pred_check
      _
    $region31: #{tpu_custom_call.1} parent=1 // pred_check_branch
      %41 = sbr.rel (0) target = $region33
    $region32: #{tpu_custom_call.1} parent=1 // pred_region
      _
    $region33: #{tpu_custom_call.1} parent=1 // pred_fallthru
      _
    // Predicated region
    $region34: #{tpu_custom_call.1} parent=1 // pred_check
      _
    $region35: #{tpu_custom_call.1} parent=1 // pred_check_branch
      %43 = sbr.rel (0) target = $region37
    $region36: #{tpu_custom_call.1} parent=1 // pred_region
      _
    $region37: #{tpu_custom_call.1} parent=1 // pred_fallthru
      _
    // Predicated region
    $region38: #{tpu_custom_call.1} parent=1 // pred_check
      _
    $region39: #{tpu_custom_call.1} parent=1 // pred_check_branch
      %45 = sbr.rel (0) target = $region41
    $region40: #{tpu_custom_call.1} parent=1 // pred_region
      %46 = dma.done [#allocation3], 8192
    $region41: #{tpu_custom_call.1} parent=1 // pred_fallthru
      _
    %v48 = vld [vmem:[%s0] sm:$0xff]
    %v49 = vld [vmem:[%s0 + $0x8] sm:$0xff]
    %v50 = vld [vmem:[%s0 + $0x10] sm:$0xff]
    %v51 = vld [vmem:[%s0 + $0x18] sm:$0xff]
    %v52 = vld [vmem:[%s0 + $0x20] sm:$0xff]
    %v53 = vld [vmem:[%s0 + $0x28] sm:$0xff]
    %v54 = vld [vmem:[%s0 + $0x30] sm:$0xff]
    %v55 = vld [vmem:[%s0 + $0x38] sm:$0xff]
    %v56 = vld [vmem:[%s0 + $0x40] sm:$0xff]
    %v57 = vld [vmem:[%s0 + $0x48] sm:$0xff]
    %v58 = vld [vmem:[%s0 + $0x50] sm:$0xff]
    %v59 = vld [vmem:[%s0 + $0x58] sm:$0xff]
    %v60 = vld [vmem:[%s0 + $0x60] sm:$0xff]
    %v61 = vld [vmem:[%s0 + $0x68] sm:$0xff]
    %v62 = vld [vmem:[%s0 + $0x70] sm:$0xff]
    %v63 = vld [vmem:[%s0 + $0x78] sm:$0xff]
    %v64 = vld [vmem:[%s0 + $0x80] sm:$0xff]
    %v65 = vld [vmem:[%s0 + $0x88] sm:$0xff]
    %v66 = vld [vmem:[%s0 + $0x90] sm:$0xff]
    %v67 = vld [vmem:[%s0 + $0x98] sm:$0xff]
    %v68 = vld [vmem:[%s0 + $0xa0] sm:$0xff]
    %v69 = vld [vmem:[%s0 + $0xa8] sm:$0xff]
    %v70 = vld [vmem:[%s0 + $0xb0] sm:$0xff]
    %v71 = vld [vmem:[%s0 + $0xb8] sm:$0xff]
    %v72 = vld [vmem:[%s0 + $0xc0] sm:$0xff]
    %v73 = vld [vmem:[%s0 + $0xc8] sm:$0xff]
    %v74 = vld [vmem:[%s0 + $0xd0] sm:$0xff]
    %v75 = vld [vmem:[%s0 + $0xd8] sm:$0xff]
    %v76 = vld [vmem:[%s0 + $0xe0] sm:$0xff]
    %v77 = vld [vmem:[%s0 + $0xe8] sm:$0xff]
    %v78 = vld [vmem:[%s0 + $0xf0] sm:$0xff]
    %v79 = vld [vmem:[%s0 + $0xf8] sm:$0xff]
    %v80 = vld [vmem:[%s0 + $0x100] sm:$0xff]
    %v81 = vld [vmem:[%s0 + $0x108] sm:$0xff]
    %v82 = vld [vmem:[%s0 + $0x110] sm:$0xff]
    %v83 = vld [vmem:[%s0 + $0x118] sm:$0xff]
    %v84 = vld [vmem:[%s0 + $0x120] sm:$0xff]
    %v85 = vld [vmem:[%s0 + $0x128] sm:$0xff]
    %v86 = vpack.c.bf16 %v49, %v48
    %v87 = vpack.c.bf16 %v51, %v50
    %v88 = vpack.c.bf16 %v53, %v52
    %v89 = vpack.c.bf16 %v55, %v54
    %v90 = vpack.c.bf16 %v57, %v56
    %v91 = vpack.c.bf16 %v59, %v58
    %v92 = vpack.c.bf16 %v61, %v60
    %v93 = vpack.c.bf16 %v63, %v62
    %v94 = vpack.c.bf16 %v65, %v64
    %v95 = vpack.c.bf16 %v67, %v66
    %v96 = vpack.c.bf16 %v69, %v68
    %v97 = vpack.c.bf16 %v71, %v70
    %v98 = vpack.c.bf16 %v73, %v72
    %v99 = vpack.c.bf16 %v75, %v74
    %v100 = vpack.c.bf16 %v77, %v76
    %v101 = vpack.c.bf16 %v79, %v78
    %v102 = vpack.c.bf16 %v81, %v80
    %v103 = vpack.c.bf16 %v83, %v82
    %v104 = vpack.c.bf16 %v85, %v84
    %v105 = vld [vmem:[%s1] sm:$0xff]
    %v106 = vld [vmem:[%s1 + $0x8] sm:$0xff]
    %v107 = vld [vmem:[%s2] sm:$0xf]
    %v108 = vunpack.c.l.bf16 %v107
    %v110 = vlaneseq
    %v111 = vshrl.u32 %v110, 7
    %v112 = vsub.s32 0, %v111
    %v113 = vrot.slane %v108, %v112
    %v114 = vlaneseq
    %v115 = vshrl.u32 %v114, 7
    %v116 = vsub.s32 2, %v115
    %v117 = vrot.slane %v108, %v116
    %v118 = vlaneseq
    %v119 = vshrl.u32 %v118, 7
    %v120 = vsub.s32 4, %v119
    %v121 = vrot.slane %v108, %v120
    %v122 = vlaneseq
    %v123 = vshrl.u32 %v122, 7
    %v124 = vsub.s32 6, %v123
    %v125 = vrot.slane %v108, %v124
    %v130 = vlaneseq
    %v131 = vshrl.u32 %v130, 7
    %v132 = vsub.s32 0, %v131
    %v133 = vrot.slane %v113, %v132
    %v134 = vlaneseq
    %v135 = vshrl.u32 %v134, 7
    %v136 = vsub.s32 0, %v135
    %v137 = vrot.slane %v117, %v136
    %v138 = vlaneseq
    %v139 = vshrl.u32 %v138, 7
    %v140 = vsub.s32 0, %v139
    %v141 = vrot.slane %v121, %v140
    %v142 = vlaneseq
    %v143 = vshrl.u32 %v142, 7
    %v144 = vsub.s32 0, %v143
    %v145 = vrot.slane %v125, %v144
    %v148 = vunpack.c.l.b16 %v105
    %v149 = vunpack.c.h.b16 %v105
    %v150 = vunpack.c.l.b16 %v106
    %v151 = vunpack.c.h.b16 %v106
    %v152 = vpack.c.b16 %v148, %v148
    %v153 = vpack.c.b16 %v149, %v149
    %v154 = vpack.c.b16 %v150, %v150
    %v155 = vpack.c.b16 %v151, %v151
    %vm156 = vcmask 56320
    %v158 = vsel %vm156, %v86, 0
    %v161 = vsel %vm156, %v87, 0
    %v164 = vsel %vm156, %v88, 0
    %v167 = vsel %vm156, %v89, 0
    %v170 = vsel %vm156, %v90, 0
    %v173 = vsel %vm156, %v91, 0
    %v176 = vsel %vm156, %v92, 0
    %v179 = vsel %vm156, %v93, 0
    %v182 = vsel %vm156, %v94, 0
    %v185 = vsel %vm156, %v95, 0
    %v188 = vsel %vm156, %v96, 0
    %v191 = vsel %vm156, %v97, 0
    %v194 = vsel %vm156, %v98, 0
    %v197 = vsel %vm156, %v99, 0
    %v200 = vsel %vm156, %v100, 0
    %v203 = vsel %vm156, %v101, 0
    %v206 = vsel %vm156, %v102, 0
    %v209 = vsel %vm156, %v103, 0
    %v212 = vsel %vm156, %v104, 0
    %vm214 = vcmask 1042432
    %vm215 = vcmask 1043456
    %v216 = vsel %vm214, 4294967295, 65535
    %v217 = vsel %vm215, %v216, 0
    %v219 = vand.u32 %v152, %v217
    %v222 = vand.u32 %v153, %v217
    %v225 = vand.u32 %v154, %v217
    %v228 = vand.u32 %v155, %v217
    %230 = vmatprep.subr.bf16.mxu0 %v222
    %231 = vmatpush1.bf16.msra.mxu0 %v219
    %232 = vmatprep.subr.bf16.mxu0 0
    %233 = vmatpush1.bf16.msra.mxu0 0
    %234 = vmatprep.subr.bf16.mxu0 0
    %235 = vmatpush1.bf16.msra.mxu0 0
    %236 = vmatprep.subr.bf16.mxu0 0
    %237 = vmatpush1.bf16.msra.mxu0 0
    %238 = vmatprep.subr.bf16.mxu0 0
    %239 = vmatpush1.bf16.msra.mxu0 0
    %240 = vmatprep.subr.bf16.mxu0 0
    %241 = vmatpush1.bf16.msra.mxu0 0
    %242 = vmatprep.subr.bf16.mxu0 0
    %243 = vmatpush1.bf16.msra.mxu0 0
    %244 = vmatprep.subr.bf16.mxu0 0
    %245 = vmatpush1.bf16.msra.mxu0 0
    %246 = vmatprep.subr.bf16.mxu0 0
    %247 = vmatpush1.bf16.msra.mxu0 0
    %248 = vmatprep.subr.bf16.mxu0 0
    %249 = vmatpush1.bf16.msra.mxu0 0
    %250 = vmatprep.subr.bf16.mxu0 0
    %251 = vmatpush1.bf16.msra.mxu0 0
    %252 = vmatprep.subr.bf16.mxu0 0
    %253 = vmatpush1.bf16.msra.mxu0 0
    %254 = vmatprep.subr.bf16.mxu0 0
    %255 = vmatpush1.bf16.msra.mxu0 0
    %256 = vmatprep.subr.bf16.mxu0 0
    %257 = vmatpush1.bf16.msra.mxu0 0
    %258 = vmatprep.subr.bf16.mxu0 0
    %259 = vmatpush1.bf16.msra.mxu0 0
    %260 = vmatprep.subr.bf16.mxu0 0
    %261 = vmatpush1.bf16.msra.mxu0 0
    %262 = vmatprep.mubr.bf16.mxu0 0
    %263 = vmatmul.mubr.bf16.gmra.mrb[0].mxu0 %v158
    %v264 = vpop.f32.mrb[0].mxu0
    %v265 = vadd.f32 %v133, %v264
    %v266 = vpop.f32.mrb[0].mxu0
    %v267 = vadd.f32 %v137, %v266
    %v268 = vpop.f32.mrb[0].mxu0
    %v269 = vadd.f32 %v133, %v268
    %v270 = vpop.f32.mrb[0].mxu0
    %v271 = vadd.f32 %v137, %v270
    %272 = vmatprep.mubr.bf16.mxu0 0
    %273 = vmatmul.mubr.bf16.gmra.mrb[0].mxu0 %v161
    %v274 = vpop.f32.mrb[0].mxu0
    %v275 = vadd.f32 %v133, %v274
    %v276 = vpop.f32.mrb[0].mxu0
    %v277 = vadd.f32 %v137, %v276
    %v278 = vpop.f32.mrb[0].mxu0
    %v279 = vadd.f32 %v133, %v278
    %v280 = vpop.f32.mrb[0].mxu0
    %v281 = vadd.f32 %v137, %v280
    %282 = vmatprep.mubr.bf16.mxu0 0
    %283 = vmatmul.mubr.bf16.gmra.mrb[0].mxu0 %v164
    %v284 = vpop.f32.mrb[0].mxu0
    %v285 = vadd.f32 %v133, %v284
    %v286 = vpop.f32.mrb[0].mxu0
    %v287 = vadd.f32 %v137, %v286
    %v288 = vpop.f32.mrb[0].mxu0
    %v289 = vadd.f32 %v133, %v288
    %v290 = vpop.f32.mrb[0].mxu0
    %v291 = vadd.f32 %v137, %v290
    %292 = vmatprep.mubr.bf16.mxu0 0
    %293 = vmatmul.mubr.bf16.gmra.mrb[0].mxu0 %v167
    %v294 = vpop.f32.mrb[0].mxu0
    %v295 = vadd.f32 %v133, %v294
    %v296 = vpop.f32.mrb[0].mxu0
    %v297 = vadd.f32 %v137, %v296
    %v298 = vpop.f32.mrb[0].mxu0
    %v299 = vadd.f32 %v133, %v298
    %v300 = vpop.f32.mrb[0].mxu0
    %v301 = vadd.f32 %v137, %v300
    %302 = vmatprep.mubr.bf16.mxu0 0
    %303 = vmatmul.mubr.bf16.gmra.mrb[0].mxu0 %v170
    %v304 = vpop.f32.mrb[0].mxu0
    %v305 = vadd.f32 %v133, %v304
    %v306 = vpop.f32.mrb[0].mxu0
    %v307 = vadd.f32 %v137, %v306
    %v308 = vpop.f32.mrb[0].mxu0
    %v309 = vadd.f32 %v133, %v308
    %v310 = vpop.f32.mrb[0].mxu0
    %v311 = vadd.f32 %v137, %v310
    %312 = vmatprep.mubr.bf16.mxu0 0
    %313 = vmatmul.mubr.bf16.gmra.mrb[0].mxu0 %v173
    %v314 = vpop.f32.mrb[0].mxu0
    %v315 = vadd.f32 %v133, %v314
    %v316 = vpop.f32.mrb[0].mxu0
    %v317 = vadd.f32 %v137, %v316
    %v318 = vpop.f32.mrb[0].mxu0
    %v319 = vadd.f32 %v133, %v318
    %v320 = vpop.f32.mrb[0].mxu0
    %v321 = vadd.f32 %v137, %v320
    %322 = vmatprep.mubr.bf16.mxu0 0
    %323 = vmatmul.mubr.bf16.gmra.mrb[0].mxu0 %v176
    %v324 = vpop.f32.mrb[0].mxu0
    %v325 = vadd.f32 %v133, %v324
    %v326 = vpop.f32.mrb[0].mxu0
    %v327 = vadd.f32 %v137, %v326
    %v328 = vpop.f32.mrb[0].mxu0
    %v329 = vadd.f32 %v133, %v328
    %v330 = vpop.f32.mrb[0].mxu0
    %v331 = vadd.f32 %v137, %v330
    %332 = vmatprep.mubr.bf16.mxu0 0
    %333 = vmatmul.mubr.bf16.gmra.mrb[0].mxu0 %v179
    %v334 = vpop.f32.mrb[0].mxu0
    %v335 = vadd.f32 %v133, %v334
    %v336 = vpop.f32.mrb[0].mxu0
    %v337 = vadd.f32 %v137, %v336
    %v338 = vpop.f32.mrb[0].mxu0
    %v339 = vadd.f32 %v133, %v338
    %v340 = vpop.f32.mrb[0].mxu0
    %v341 = vadd.f32 %v137, %v340
    %342 = vmatprep.mubr.bf16.mxu0 0
    %343 = vmatmul.mubr.bf16.gmra.mrb[0].mxu0 %v182
    %v344 = vpop.f32.mrb[0].mxu0
    %v345 = vadd.f32 %v133, %v344
    %v346 = vpop.f32.mrb[0].mxu0
    %v347 = vadd.f32 %v137, %v346
    %v348 = vpop.f32.mrb[0].mxu0
    %v349 = vadd.f32 %v133, %v348
    %v350 = vpop.f32.mrb[0].mxu0
    %v351 = vadd.f32 %v137, %v350
    %352 = vmatprep.mubr.bf16.mxu0 0
    %353 = vmatmul.mubr.bf16.gmra.mrb[0].mxu0 %v185
    %v354 = vpop.f32.mrb[0].mxu0
    %v355 = vadd.f32 %v133, %v354
    %v356 = vpop.f32.mrb[0].mxu0
    %v357 = vadd.f32 %v137, %v356
    %v358 = vpop.f32.mrb[0].mxu0
    %v359 = vadd.f32 %v133, %v358
    %v360 = vpop.f32.mrb[0].mxu0
    %v361 = vadd.f32 %v137, %v360
    %362 = vmatprep.mubr.bf16.mxu0 0
    %363 = vmatmul.mubr.bf16.gmra.mrb[0].mxu0 %v188
    %v364 = vpop.f32.mrb[0].mxu0
    %v365 = vadd.f32 %v133, %v364
    %v366 = vpop.f32.mrb[0].mxu0
    %v367 = vadd.f32 %v137, %v366
    %v368 = vpop.f32.mrb[0].mxu0
    %v369 = vadd.f32 %v133, %v368
    %v370 = vpop.f32.mrb[0].mxu0
    %v371 = vadd.f32 %v137, %v370
    %372 = vmatprep.mubr.bf16.mxu0 0
    %373 = vmatmul.mubr.bf16.gmra.mrb[0].mxu0 %v191
    %v374 = vpop.f32.mrb[0].mxu0
    %v375 = vadd.f32 %v133, %v374
    %v376 = vpop.f32.mrb[0].mxu0
    %v377 = vadd.f32 %v137, %v376
    %v378 = vpop.f32.mrb[0].mxu0
    %v379 = vadd.f32 %v133, %v378
    %v380 = vpop.f32.mrb[0].mxu0
    %v381 = vadd.f32 %v137, %v380
    %382 = vmatprep.mubr.bf16.mxu0 0
    %383 = vmatmul.mubr.bf16.gmra.mrb[0].mxu0 %v194
    %v384 = vpop.f32.mrb[0].mxu0
    %v385 = vadd.f32 %v133, %v384
    %v386 = vpop.f32.mrb[0].mxu0
    %v387 = vadd.f32 %v137, %v386
    %v388 = vpop.f32.mrb[0].mxu0
    %v389 = vadd.f32 %v133, %v388
    %v390 = vpop.f32.mrb[0].mxu0
    %v391 = vadd.f32 %v137, %v390
    %392 = vmatprep.mubr.bf16.mxu0 0
    %393 = vmatmul.mubr.bf16.gmra.mrb[0].mxu0 %v197
    %v394 = vpop.f32.mrb[0].mxu0
    %v395 = vadd.f32 %v133, %v394
    %v396 = vpop.f32.mrb[0].mxu0
    %v397 = vadd.f32 %v137, %v396
    %v398 = vpop.f32.mrb[0].mxu0
    %v399 = vadd.f32 %v133, %v398
    %v400 = vpop.f32.mrb[0].mxu0
    %v401 = vadd.f32 %v137, %v400
    %402 = vmatprep.mubr.bf16.mxu0 0
    %403 = vmatmul.mubr.bf16.gmra.mrb[0].mxu0 %v200
    %v404 = vpop.f32.mrb[0].mxu0
    %v405 = vadd.f32 %v133, %v404
    %v406 = vpop.f32.mrb[0].mxu0
    %v407 = vadd.f32 %v137, %v406
    %v408 = vpop.f32.mrb[0].mxu0
    %v409 = vadd.f32 %v133, %v408
    %v410 = vpop.f32.mrb[0].mxu0
    %v411 = vadd.f32 %v137, %v410
    %412 = vmatprep.mubr.bf16.mxu0 0
    %413 = vmatmul.mubr.bf16.gmra.mrb[0].mxu0 %v203
    %v414 = vpop.f32.mrb[0].mxu0
    %v415 = vadd.f32 %v133, %v414
    %v416 = vpop.f32.mrb[0].mxu0
    %v417 = vadd.f32 %v137, %v416
    %v418 = vpop.f32.mrb[0].mxu0
    %v419 = vadd.f32 %v133, %v418
    %v420 = vpop.f32.mrb[0].mxu0
    %v421 = vadd.f32 %v137, %v420
    %422 = vmatprep.mubr.bf16.mxu0 0
    %423 = vmatmul.mubr.bf16.gmra.mrb[0].mxu0 %v206
    %v424 = vpop.f32.mrb[0].mxu0
    %v425 = vadd.f32 %v133, %v424
    %v426 = vpop.f32.mrb[0].mxu0
    %v427 = vadd.f32 %v137, %v426
    %v428 = vpop.f32.mrb[0].mxu0
    %v429 = vadd.f32 %v133, %v428
    %v430 = vpop.f32.mrb[0].mxu0
    %v431 = vadd.f32 %v137, %v430
    %432 = vmatprep.mubr.bf16.mxu0 0
    %433 = vmatmul.mubr.bf16.gmra.mrb[0].mxu0 %v209
    %v434 = vpop.f32.mrb[0].mxu0
    %v435 = vadd.f32 %v133, %v434
    %v436 = vpop.f32.mrb[0].mxu0
    %v437 = vadd.f32 %v137, %v436
    %v438 = vpop.f32.mrb[0].mxu0
    %v439 = vadd.f32 %v133, %v438
    %v440 = vpop.f32.mrb[0].mxu0
    %v441 = vadd.f32 %v137, %v440
    %442 = vmatprep.mubr.bf16.mxu0 0
    %443 = vmatmul.mubr.bf16.gmra.mrb[0].mxu0 %v212
    %v444 = vpop.f32.mrb[0].mxu0
    %v445 = vadd.f32 %v133, %v444
    %v446 = vpop.f32.mrb[0].mxu0
    %v447 = vadd.f32 %v137, %v446
    %v448 = vpop.f32.mrb[0].mxu0
    %v449 = vadd.f32 %v133, %v448
    %v450 = vpop.f32.mrb[0].mxu0
    %v451 = vadd.f32 %v137, %v450
    %452 = vdwg.mxu0
    %453 = vmatprep.subr.bf16.mxu0 %v228
    %454 = vmatpush1.bf16.msra.mxu0 %v225
    %455 = vmatprep.subr.bf16.mxu0 0
    %456 = vmatpush1.bf16.msra.mxu0 0
    %457 = vmatprep.subr.bf16.mxu0 0
    %458 = vmatpush1.bf16.msra.mxu0 0
    %459 = vmatprep.subr.bf16.mxu0 0
    %460 = vmatpush1.bf16.msra.mxu0 0
    %461 = vmatprep.subr.bf16.mxu0 0
    %462 = vmatpush1.bf16.msra.mxu0 0
    %463 = vmatprep.subr.bf16.mxu0 0
    %464 = vmatpush1.bf16.msra.mxu0 0
    %465 = vmatprep.subr.bf16.mxu0 0
    %466 = vmatpush1.bf16.msra.mxu0 0
    %467 = vmatprep.subr.bf16.mxu0 0
    %468 = vmatpush1.bf16.msra.mxu0 0
    %469 = vmatprep.subr.bf16.mxu0 0
    %470 = vmatpush1.bf16.msra.mxu0 0
    %471 = vmatprep.subr.bf16.mxu0 0
    %472 = vmatpush1.bf16.msra.mxu0 0
    %473 = vmatprep.subr.bf16.mxu0 0
    %474 = vmatpush1.bf16.msra.mxu0 0
    %475 = vmatprep.subr.bf16.mxu0 0
    %476 = vmatpush1.bf16.msra.mxu0 0
    %477 = vmatprep.subr.bf16.mxu0 0
    %478 = vmatpush1.bf16.msra.mxu0 0
    %479 = vmatprep.subr.bf16.mxu0 0
    %480 = vmatpush1.bf16.msra.mxu0 0
    %481 = vmatprep.subr.bf16.mxu0 0
    %482 = vmatpush1.bf16.msra.mxu0 0
    %483 = vmatprep.subr.bf16.mxu0 0
    %484 = vmatpush1.bf16.msra.mxu0 0
    %485 = vmatprep.mubr.bf16.mxu0 0
    %486 = vmatmul.mubr.bf16.gmra.mrb[0].mxu0 %v158
    %v487 = vpop.f32.mrb[0].mxu0
    %v488 = vadd.f32 %v141, %v487
    %v489 = vpop.f32.mrb[0].mxu0
    %v490 = vadd.f32 %v145, %v489
    %v491 = vpop.f32.mrb[0].mxu0
    %v492 = vadd.f32 %v141, %v491
    %v493 = vpop.f32.mrb[0].mxu0
    %v494 = vadd.f32 %v145, %v493
    %495 = vmatprep.mubr.bf16.mxu0 0
    %496 = vmatmul.mubr.bf16.gmra.mrb[0].mxu0 %v161
    %v497 = vpop.f32.mrb[0].mxu0
    %v498 = vadd.f32 %v141, %v497
    %v499 = vpop.f32.mrb[0].mxu0
    %v500 = vadd.f32 %v145, %v499
    %v501 = vpop.f32.mrb[0].mxu0
    %v502 = vadd.f32 %v141, %v501
    %v503 = vpop.f32.mrb[0].mxu0
    %v504 = vadd.f32 %v145, %v503
    %505 = vmatprep.mubr.bf16.mxu0 0
    %506 = vmatmul.mubr.bf16.gmra.mrb[0].mxu0 %v164
    %v507 = vpop.f32.mrb[0].mxu0
    %v508 = vadd.f32 %v141, %v507
    %v509 = vpop.f32.mrb[0].mxu0
    %v510 = vadd.f32 %v145, %v509
    %v511 = vpop.f32.mrb[0].mxu0
    %v512 = vadd.f32 %v141, %v511
    %v513 = vpop.f32.mrb[0].mxu0
    %v514 = vadd.f32 %v145, %v513
    %515 = vmatprep.mubr.bf16.mxu0 0
    %516 = vmatmul.mubr.bf16.gmra.mrb[0].mxu0 %v167
    %v517 = vpop.f32.mrb[0].mxu0
    %v518 = vadd.f32 %v141, %v517
    %v519 = vpop.f32.mrb[0].mxu0
    %v520 = vadd.f32 %v145, %v519
    %v521 = vpop.f32.mrb[0].mxu0
    %v522 = vadd.f32 %v141, %v521
    %v523 = vpop.f32.mrb[0].mxu0
    %v524 = vadd.f32 %v145, %v523
    %525 = vmatprep.mubr.bf16.mxu0 0
    %526 = vmatmul.mubr.bf16.gmra.mrb[0].mxu0 %v170
    %v527 = vpop.f32.mrb[0].mxu0
    %v528 = vadd.f32 %v141, %v527
    %v529 = vpop.f32.mrb[0].mxu0
    %v530 = vadd.f32 %v145, %v529
    %v531 = vpop.f32.mrb[0].mxu0
    %v532 = vadd.f32 %v141, %v531
    %v533 = vpop.f32.mrb[0].mxu0
    %v534 = vadd.f32 %v145, %v533
    %535 = vmatprep.mubr.bf16.mxu0 0
    %536 = vmatmul.mubr.bf16.gmra.mrb[0].mxu0 %v173
    %v537 = vpop.f32.mrb[0].mxu0
    %v538 = vadd.f32 %v141, %v537
    %v539 = vpop.f32.mrb[0].mxu0
    %v540 = vadd.f32 %v145, %v539
    %v541 = vpop.f32.mrb[0].mxu0
    %v542 = vadd.f32 %v141, %v541
    %v543 = vpop.f32.mrb[0].mxu0
    %v544 = vadd.f32 %v145, %v543
    %545 = vmatprep.mubr.bf16.mxu0 0
    %546 = vmatmul.mubr.bf16.gmra.mrb[0].mxu0 %v176
    %v547 = vpop.f32.mrb[0].mxu0
    %v548 = vadd.f32 %v141, %v547
    %v549 = vpop.f32.mrb[0].mxu0
    %v550 = vadd.f32 %v145, %v549
    %v551 = vpop.f32.mrb[0].mxu0
    %v552 = vadd.f32 %v141, %v551
    %v553 = vpop.f32.mrb[0].mxu0
    %v554 = vadd.f32 %v145, %v553
    %555 = vmatprep.mubr.bf16.mxu0 0
    %556 = vmatmul.mubr.bf16.gmra.mrb[0].mxu0 %v179
    %v557 = vpop.f32.mrb[0].mxu0
    %v558 = vadd.f32 %v141, %v557
    %v559 = vpop.f32.mrb[0].mxu0
    %v560 = vadd.f32 %v145, %v559
    %v561 = vpop.f32.mrb[0].mxu0
    %v562 = vadd.f32 %v141, %v561
    %v563 = vpop.f32.mrb[0].mxu0
    %v564 = vadd.f32 %v145, %v563
    %565 = vmatprep.mubr.bf16.mxu0 0
    %566 = vmatmul.mubr.bf16.gmra.mrb[0].mxu0 %v182
    %v567 = vpop.f32.mrb[0].mxu0
    %v568 = vadd.f32 %v141, %v567
    %v569 = vpop.f32.mrb[0].mxu0
    %v570 = vadd.f32 %v145, %v569
    %v571 = vpop.f32.mrb[0].mxu0
    %v572 = vadd.f32 %v141, %v571
    %v573 = vpop.f32.mrb[0].mxu0
    %v574 = vadd.f32 %v145, %v573
    %575 = vmatprep.mubr.bf16.mxu0 0
    %576 = vmatmul.mubr.bf16.gmra.mrb[0].mxu0 %v185
    %v577 = vpop.f32.mrb[0].mxu0
    %v578 = vadd.f32 %v141, %v577
    %v579 = vpop.f32.mrb[0].mxu0
    %v580 = vadd.f32 %v145, %v579
    %v581 = vpop.f32.mrb[0].mxu0
    %v582 = vadd.f32 %v141, %v581
    %v583 = vpop.f32.mrb[0].mxu0
    %v584 = vadd.f32 %v145, %v583
    %585 = vmatprep.mubr.bf16.mxu0 0
    %586 = vmatmul.mubr.bf16.gmra.mrb[0].mxu0 %v188
    %v587 = vpop.f32.mrb[0].mxu0
    %v588 = vadd.f32 %v141, %v587
    %v589 = vpop.f32.mrb[0].mxu0
    %v590 = vadd.f32 %v145, %v589
    %v591 = vpop.f32.mrb[0].mxu0
    %v592 = vadd.f32 %v141, %v591
    %v593 = vpop.f32.mrb[0].mxu0
    %v594 = vadd.f32 %v145, %v593
    %595 = vmatprep.mubr.bf16.mxu0 0
    %596 = vmatmul.mubr.bf16.gmra.mrb[0].mxu0 %v191
    %v597 = vpop.f32.mrb[0].mxu0
    %v598 = vadd.f32 %v141, %v597
    %v599 = vpop.f32.mrb[0].mxu0
    %v600 = vadd.f32 %v145, %v599
    %v601 = vpop.f32.mrb[0].mxu0
    %v602 = vadd.f32 %v141, %v601
    %v603 = vpop.f32.mrb[0].mxu0
    %v604 = vadd.f32 %v145, %v603
    %605 = vmatprep.mubr.bf16.mxu0 0
    %606 = vmatmul.mubr.bf16.gmra.mrb[0].mxu0 %v194
    %v607 = vpop.f32.mrb[0].mxu0
    %v608 = vadd.f32 %v141, %v607
    %v609 = vpop.f32.mrb[0].mxu0
    %v610 = vadd.f32 %v145, %v609
    %v611 = vpop.f32.mrb[0].mxu0
    %v612 = vadd.f32 %v141, %v611
    %v613 = vpop.f32.mrb[0].mxu0
    %v614 = vadd.f32 %v145, %v613
    %615 = vmatprep.mubr.bf16.mxu0 0
    %616 = vmatmul.mubr.bf16.gmra.mrb[0].mxu0 %v197
    %v617 = vpop.f32.mrb[0].mxu0
    %v618 = vadd.f32 %v141, %v617
    %v619 = vpop.f32.mrb[0].mxu0
    %v620 = vadd.f32 %v145, %v619
    %v621 = vpop.f32.mrb[0].mxu0
    %v622 = vadd.f32 %v141, %v621
    %v623 = vpop.f32.mrb[0].mxu0
    %v624 = vadd.f32 %v145, %v623
    %625 = vmatprep.mubr.bf16.mxu0 0
    %626 = vmatmul.mubr.bf16.gmra.mrb[0].mxu0 %v200
    %v627 = vpop.f32.mrb[0].mxu0
    %v628 = vadd.f32 %v141, %v627
    %v629 = vpop.f32.mrb[0].mxu0
    %v630 = vadd.f32 %v145, %v629
    %v631 = vpop.f32.mrb[0].mxu0
    %v632 = vadd.f32 %v141, %v631
    %v633 = vpop.f32.mrb[0].mxu0
    %v634 = vadd.f32 %v145, %v633
    %635 = vmatprep.mubr.bf16.mxu0 0
    %636 = vmatmul.mubr.bf16.gmra.mrb[0].mxu0 %v203
    %v637 = vpop.f32.mrb[0].mxu0
    %v638 = vadd.f32 %v141, %v637
    %v639 = vpop.f32.mrb[0].mxu0
    %v640 = vadd.f32 %v145, %v639
    %v641 = vpop.f32.mrb[0].mxu0
    %v642 = vadd.f32 %v141, %v641
    %v643 = vpop.f32.mrb[0].mxu0
    %v644 = vadd.f32 %v145, %v643
    %645 = vmatprep.mubr.bf16.mxu0 0
    %646 = vmatmul.mubr.bf16.gmra.mrb[0].mxu0 %v206
    %v647 = vpop.f32.mrb[0].mxu0
    %v648 = vadd.f32 %v141, %v647
    %v649 = vpop.f32.mrb[0].mxu0
    %v650 = vadd.f32 %v145, %v649
    %v651 = vpop.f32.mrb[0].mxu0
    %v652 = vadd.f32 %v141, %v651
    %v653 = vpop.f32.mrb[0].mxu0
    %v654 = vadd.f32 %v145, %v653
    %655 = vmatprep.mubr.bf16.mxu0 0
    %656 = vmatmul.mubr.bf16.gmra.mrb[0].mxu0 %v209
    %v657 = vpop.f32.mrb[0].mxu0
    %v658 = vadd.f32 %v141, %v657
    %v659 = vpop.f32.mrb[0].mxu0
    %v660 = vadd.f32 %v145, %v659
    %v661 = vpop.f32.mrb[0].mxu0
    %v662 = vadd.f32 %v141, %v661
    %v663 = vpop.f32.mrb[0].mxu0
    %v664 = vadd.f32 %v145, %v663
    %665 = vmatprep.mubr.bf16.mxu0 0
    %666 = vmatmul.mubr.bf16.gmra.mrb[0].mxu0 %v212
    %v667 = vpop.f32.mrb[0].mxu0
    %v668 = vadd.f32 %v141, %v667
    %v669 = vpop.f32.mrb[0].mxu0
    %v670 = vadd.f32 %v145, %v669
    %v671 = vpop.f32.mrb[0].mxu0
    %v672 = vadd.f32 %v141, %v671
    %v673 = vpop.f32.mrb[0].mxu0
    %v674 = vadd.f32 %v145, %v673
    %675 = vdwg.mxu0
    %v676 = vmul.f32 %v265, 0.01
    %v677 = vmul.f32 %v267, 0.01
    %v678 = vmul.f32 %v488, 0.01
    %v679 = vmul.f32 %v490, 0.01
    %v680 = vmul.f32 %v269, 0.01
    %v681 = vmul.f32 %v271, 0.01
    %v682 = vmul.f32 %v492, 0.01
    %v683 = vmul.f32 %v494, 0.01
    %v684 = vmul.f32 %v275, 0.01
    %v685 = vmul.f32 %v277, 0.01
    %v686 = vmul.f32 %v498, 0.01
    %v687 = vmul.f32 %v500, 0.01
    %v688 = vmul.f32 %v279, 0.01
    %v689 = vmul.f32 %v281, 0.01
    %v690 = vmul.f32 %v502, 0.01
    %v691 = vmul.f32 %v504, 0.01
    %v692 = vmul.f32 %v285, 0.01
    %v693 = vmul.f32 %v287, 0.01
    %v694 = vmul.f32 %v508, 0.01
    %v695 = vmul.f32 %v510, 0.01
    %v696 = vmul.f32 %v289, 0.01
    %v697 = vmul.f32 %v291, 0.01
    %v698 = vmul.f32 %v512, 0.01
    %v699 = vmul.f32 %v514, 0.01
    %v700 = vmul.f32 %v295, 0.01
    %v701 = vmul.f32 %v297, 0.01
    %v702 = vmul.f32 %v518, 0.01
    %v703 = vmul.f32 %v520, 0.01
    %v704 = vmul.f32 %v299, 0.01
    %v705 = vmul.f32 %v301, 0.01
    %v706 = vmul.f32 %v522, 0.01
    %v707 = vmul.f32 %v524, 0.01
    %v708 = vmul.f32 %v305, 0.01
    %v709 = vmul.f32 %v307, 0.01
    %v710 = vmul.f32 %v528, 0.01
    %v711 = vmul.f32 %v530, 0.01
    %v712 = vmul.f32 %v309, 0.01
    %v713 = vmul.f32 %v311, 0.01
    %v714 = vmul.f32 %v532, 0.01
    %v715 = vmul.f32 %v534, 0.01
    %v716 = vmul.f32 %v315, 0.01
    %v717 = vmul.f32 %v317, 0.01
    %v718 = vmul.f32 %v538, 0.01
    %v719 = vmul.f32 %v540, 0.01
    %v720 = vmul.f32 %v319, 0.01
    %v721 = vmul.f32 %v321, 0.01
    %v722 = vmul.f32 %v542, 0.01
    %v723 = vmul.f32 %v544, 0.01
    %v724 = vmul.f32 %v325, 0.01
    %v725 = vmul.f32 %v327, 0.01
    %v726 = vmul.f32 %v548, 0.01
    %v727 = vmul.f32 %v550, 0.01
    %v728 = vmul.f32 %v329, 0.01
    %v729 = vmul.f32 %v331, 0.01
    %v730 = vmul.f32 %v552, 0.01
    %v731 = vmul.f32 %v554, 0.01
    %v732 = vmul.f32 %v335, 0.01
    %v733 = vmul.f32 %v337, 0.01
    %v734 = vmul.f32 %v558, 0.01
    %v735 = vmul.f32 %v560, 0.01
    %v736 = vmul.f32 %v339, 0.01
    %v737 = vmul.f32 %v341, 0.01
    %v738 = vmul.f32 %v562, 0.01
    %v739 = vmul.f32 %v564, 0.01
    %v740 = vmul.f32 %v345, 0.01
    %v741 = vmul.f32 %v347, 0.01
    %v742 = vmul.f32 %v568, 0.01
    %v743 = vmul.f32 %v570, 0.01
    %v744 = vmul.f32 %v349, 0.01
    %v745 = vmul.f32 %v351, 0.01
    %v746 = vmul.f32 %v572, 0.01
    %v747 = vmul.f32 %v574, 0.01
    %v748 = vmul.f32 %v355, 0.01
    %v749 = vmul.f32 %v357, 0.01
    %v750 = vmul.f32 %v578, 0.01
    %v751 = vmul.f32 %v580, 0.01
    %v752 = vmul.f32 %v359, 0.01
    %v753 = vmul.f32 %v361, 0.01
    %v754 = vmul.f32 %v582, 0.01
    %v755 = vmul.f32 %v584, 0.01
    %v756 = vmul.f32 %v365, 0.01
    %v757 = vmul.f32 %v367, 0.01
    %v758 = vmul.f32 %v588, 0.01
    %v759 = vmul.f32 %v590, 0.01
    %v760 = vmul.f32 %v369, 0.01
    %v761 = vmul.f32 %v371, 0.01
    %v762 = vmul.f32 %v592, 0.01
    %v763 = vmul.f32 %v594, 0.01
    %v764 = vmul.f32 %v375, 0.01
    %v765 = vmul.f32 %v377, 0.01
    %v766 = vmul.f32 %v598, 0.01
    %v767 = vmul.f32 %v600, 0.01
    %v768 = vmul.f32 %v379, 0.01
    %v769 = vmul.f32 %v381, 0.01
    %v770 = vmul.f32 %v602, 0.01
    %v771 = vmul.f32 %v604, 0.01
    %v772 = vmul.f32 %v385, 0.01
    %v773 = vmul.f32 %v387, 0.01
    %v774 = vmul.f32 %v608, 0.01
    %v775 = vmul.f32 %v610, 0.01
    %v776 = vmul.f32 %v389, 0.01
    %v777 = vmul.f32 %v391, 0.01
    %v778 = vmul.f32 %v612, 0.01
    %v779 = vmul.f32 %v614, 0.01
    %v780 = vmul.f32 %v395, 0.01
    %v781 = vmul.f32 %v397, 0.01
    %v782 = vmul.f32 %v618, 0.01
    %v783 = vmul.f32 %v620, 0.01
    %v784 = vmul.f32 %v399, 0.01
    %v785 = vmul.f32 %v401, 0.01
    %v786 = vmul.f32 %v622, 0.01
    %v787 = vmul.f32 %v624, 0.01
    %v788 = vmul.f32 %v405, 0.01
    %v789 = vmul.f32 %v407, 0.01
    %v790 = vmul.f32 %v628, 0.01
    %v791 = vmul.f32 %v630, 0.01
    %v792 = vmul.f32 %v409, 0.01
    %v793 = vmul.f32 %v411, 0.01
    %v794 = vmul.f32 %v632, 0.01
    %v795 = vmul.f32 %v634, 0.01
    %v796 = vmul.f32 %v415, 0.01
    %v797 = vmul.f32 %v417, 0.01
    %v798 = vmul.f32 %v638, 0.01
    %v799 = vmul.f32 %v640, 0.01
    %v800 = vmul.f32 %v419, 0.01
    %v801 = vmul.f32 %v421, 0.01
    %v802 = vmul.f32 %v642, 0.01
    %v803 = vmul.f32 %v644, 0.01
    %v804 = vmul.f32 %v425, 0.01
    %v805 = vmul.f32 %v427, 0.01
    %v806 = vmul.f32 %v648, 0.01
    %v807 = vmul.f32 %v650, 0.01
    %v808 = vmul.f32 %v429, 0.01
    %v809 = vmul.f32 %v431, 0.01
    %v810 = vmul.f32 %v652, 0.01
    %v811 = vmul.f32 %v654, 0.01
    %v812 = vmul.f32 %v435, 0.01
    %v813 = vmul.f32 %v437, 0.01
    %v814 = vmul.f32 %v658, 0.01
    %v815 = vmul.f32 %v660, 0.01
    %v816 = vmul.f32 %v439, 0.01
    %v817 = vmul.f32 %v441, 0.01
    %v818 = vmul.f32 %v662, 0.01
    %v819 = vmul.f32 %v664, 0.01
    %v820 = vmul.f32 %v445, 0.01
    %v821 = vmul.f32 %v447, 0.01
    %v822 = vmul.f32 %v668, 0.01
    %v823 = vmul.f32 %v670, 0.01
    %v824 = vmul.f32 %v449, 0.01
    %v825 = vmul.f32 %v451, 0.01
    %v826 = vmul.f32 %v672, 0.01
    %v827 = vmul.f32 %v674, 0.01
    %v828 = vmax.f32 %v265, %v676
    %v829 = vmax.f32 %v267, %v677
    %v830 = vmax.f32 %v488, %v678
    %v831 = vmax.f32 %v490, %v679
    %v832 = vmax.f32 %v269, %v680
    %v833 = vmax.f32 %v271, %v681
    %v834 = vmax.f32 %v492, %v682
    %v835 = vmax.f32 %v494, %v683
    %v836 = vmax.f32 %v275, %v684
    %v837 = vmax.f32 %v277, %v685
    %v838 = vmax.f32 %v498, %v686
    %v839 = vmax.f32 %v500, %v687
    %v840 = vmax.f32 %v279, %v688
    %v841 = vmax.f32 %v281, %v689
    %v842 = vmax.f32 %v502, %v690
    %v843 = vmax.f32 %v504, %v691
    %v844 = vmax.f32 %v285, %v692
    %v845 = vmax.f32 %v287, %v693
    %v846 = vmax.f32 %v508, %v694
    %v847 = vmax.f32 %v510, %v695
    %v848 = vmax.f32 %v289, %v696
    %v849 = vmax.f32 %v291, %v697
    %v850 = vmax.f32 %v512, %v698
    %v851 = vmax.f32 %v514, %v699
    %v852 = vmax.f32 %v295, %v700
    %v853 = vmax.f32 %v297, %v701
    %v854 = vmax.f32 %v518, %v702
    %v855 = vmax.f32 %v520, %v703
    %v856 = vmax.f32 %v299, %v704
    %v857 = vmax.f32 %v301, %v705
    %v858 = vmax.f32 %v522, %v706
    %v859 = vmax.f32 %v524, %v707
    %v860 = vmax.f32 %v305, %v708
    %v861 = vmax.f32 %v307, %v709
    %v862 = vmax.f32 %v528, %v710
    %v863 = vmax.f32 %v530, %v711
    %v864 = vmax.f32 %v309, %v712
    %v865 = vmax.f32 %v311, %v713
    %v866 = vmax.f32 %v532, %v714
    %v867 = vmax.f32 %v534, %v715
    %v868 = vmax.f32 %v315, %v716
    %v869 = vmax.f32 %v317, %v717
    %v870 = vmax.f32 %v538, %v718
    %v871 = vmax.f32 %v540, %v719
    %v872 = vmax.f32 %v319, %v720
    %v873 = vmax.f32 %v321, %v721
    %v874 = vmax.f32 %v542, %v722
    %v875 = vmax.f32 %v544, %v723
    %v876 = vmax.f32 %v325, %v724
    %v877 = vmax.f32 %v327, %v725
    %v878 = vmax.f32 %v548, %v726
    %v879 = vmax.f32 %v550, %v727
    %v880 = vmax.f32 %v329, %v728
    %v881 = vmax.f32 %v331, %v729
    %v882 = vmax.f32 %v552, %v730
    %v883 = vmax.f32 %v554, %v731
    %v884 = vmax.f32 %v335, %v732
    %v885 = vmax.f32 %v337, %v733
    %v886 = vmax.f32 %v558, %v734
    %v887 = vmax.f32 %v560, %v735
    %v888 = vmax.f32 %v339, %v736
    %v889 = vmax.f32 %v341, %v737
    %v890 = vmax.f32 %v562, %v738
    %v891 = vmax.f32 %v564, %v739
    %v892 = vmax.f32 %v345, %v740
    %v893 = vmax.f32 %v347, %v741
    %v894 = vmax.f32 %v568, %v742
    %v895 = vmax.f32 %v570, %v743
    %v896 = vmax.f32 %v349, %v744
    %v897 = vmax.f32 %v351, %v745
    %v898 = vmax.f32 %v572, %v746
    %v899 = vmax.f32 %v574, %v747
    %v900 = vmax.f32 %v355, %v748
    %v901 = vmax.f32 %v357, %v749
    %v902 = vmax.f32 %v578, %v750
    %v903 = vmax.f32 %v580, %v751
    %v904 = vmax.f32 %v359, %v752
    %v905 = vmax.f32 %v361, %v753
    %v906 = vmax.f32 %v582, %v754
    %v907 = vmax.f32 %v584, %v755
    %v908 = vmax.f32 %v365, %v756
    %v909 = vmax.f32 %v367, %v757
    %v910 = vmax.f32 %v588, %v758
    %v911 = vmax.f32 %v590, %v759
    %v912 = vmax.f32 %v369, %v760
    %v913 = vmax.f32 %v371, %v761
    %v914 = vmax.f32 %v592, %v762
    %v915 = vmax.f32 %v594, %v763
    %v916 = vmax.f32 %v375, %v764
    %v917 = vmax.f32 %v377, %v765
    %v918 = vmax.f32 %v598, %v766
    %v919 = vmax.f32 %v600, %v767
    %v920 = vmax.f32 %v379, %v768
    %v921 = vmax.f32 %v381, %v769
    %v922 = vmax.f32 %v602, %v770
    %v923 = vmax.f32 %v604, %v771
    %v924 = vmax.f32 %v385, %v772
    %v925 = vmax.f32 %v387, %v773
    %v926 = vmax.f32 %v608, %v774
    %v927 = vmax.f32 %v610, %v775
    %v928 = vmax.f32 %v389, %v776
    %v929 = vmax.f32 %v391, %v777
    %v930 = vmax.f32 %v612, %v778
    %v931 = vmax.f32 %v614, %v779
    %v932 = vmax.f32 %v395, %v780
    %v933 = vmax.f32 %v397, %v781
    %v934 = vmax.f32 %v618, %v782
    %v935 = vmax.f32 %v620, %v783
    %v936 = vmax.f32 %v399, %v784
    %v937 = vmax.f32 %v401, %v785
    %v938 = vmax.f32 %v622, %v786
    %v939 = vmax.f32 %v624, %v787
    %v940 = vmax.f32 %v405, %v788
    %v941 = vmax.f32 %v407, %v789
    %v942 = vmax.f32 %v628, %v790
    %v943 = vmax.f32 %v630, %v791
    %v944 = vmax.f32 %v409, %v792
    %v945 = vmax.f32 %v411, %v793
    %v946 = vmax.f32 %v632, %v794
    %v947 = vmax.f32 %v634, %v795
    %v948 = vmax.f32 %v415, %v796
    %v949 = vmax.f32 %v417, %v797
    %v950 = vmax.f32 %v638, %v798
    %v951 = vmax.f32 %v640, %v799
    %v952 = vmax.f32 %v419, %v800
    %v953 = vmax.f32 %v421, %v801
    %v954 = vmax.f32 %v642, %v802
    %v955 = vmax.f32 %v644, %v803
    %v956 = vmax.f32 %v425, %v804
    %v957 = vmax.f32 %v427, %v805
    %v958 = vmax.f32 %v648, %v806
    %v959 = vmax.f32 %v650, %v807
    %v960 = vmax.f32 %v429, %v808
    %v961 = vmax.f32 %v431, %v809
    %v962 = vmax.f32 %v652, %v810
    %v963 = vmax.f32 %v654, %v811
    %v964 = vmax.f32 %v435, %v812
    %v965 = vmax.f32 %v437, %v813
    %v966 = vmax.f32 %v658, %v814
    %v967 = vmax.f32 %v660, %v815
    %v968 = vmax.f32 %v439, %v816
    %v969 = vmax.f32 %v441, %v817
    %v970 = vmax.f32 %v662, %v818
    %v971 = vmax.f32 %v664, %v819
    %v972 = vmax.f32 %v445, %v820
    %v973 = vmax.f32 %v447, %v821
    %v974 = vmax.f32 %v668, %v822
    %v975 = vmax.f32 %v670, %v823
    %v976 = vmax.f32 %v449, %v824
    %v977 = vmax.f32 %v451, %v825
    %v978 = vmax.f32 %v672, %v826
    %v979 = vmax.f32 %v674, %v827
    %v980 = vpack.c.bf16 %v832, %v828
    %v981 = vpack.c.bf16 %v833, %v829
    %v982 = vpack.c.bf16 %v834, %v830
    %v983 = vpack.c.bf16 %v835, %v831
    %v984 = vpack.c.bf16 %v840, %v836
    %v985 = vpack.c.bf16 %v841, %v837
    %v986 = vpack.c.bf16 %v842, %v838
    %v987 = vpack.c.bf16 %v843, %v839
    %v988 = vpack.c.bf16 %v848, %v844
    %v989 = vpack.c.bf16 %v849, %v845
    %v990 = vpack.c.bf16 %v850, %v846
    %v991 = vpack.c.bf16 %v851, %v847
    %v992 = vpack.c.bf16 %v856, %v852
    %v993 = vpack.c.bf16 %v857, %v853
    %v994 = vpack.c.bf16 %v858, %v854
    %v995 = vpack.c.bf16 %v859, %v855
    %v996 = vpack.c.bf16 %v864, %v860
    %v997 = vpack.c.bf16 %v865, %v861
    %v998 = vpack.c.bf16 %v866, %v862
    %v999 = vpack.c.bf16 %v867, %v863
    %v1000 = vpack.c.bf16 %v872, %v868
    %v1001 = vpack.c.bf16 %v873, %v869
    %v1002 = vpack.c.bf16 %v874, %v870
    %v1003 = vpack.c.bf16 %v875, %v871
    %v1004 = vpack.c.bf16 %v880, %v876
    %v1005 = vpack.c.bf16 %v881, %v877
    %v1006 = vpack.c.bf16 %v882, %v878
    %v1007 = vpack.c.bf16 %v883, %v879
    %v1008 = vpack.c.bf16 %v888, %v884
    %v1009 = vpack.c.bf16 %v889, %v885
    %v1010 = vpack.c.bf16 %v890, %v886
    %v1011 = vpack.c.bf16 %v891, %v887
    %v1012 = vpack.c.bf16 %v896, %v892
    %v1013 = vpack.c.bf16 %v897, %v893
    %v1014 = vpack.c.bf16 %v898, %v894
    %v1015 = vpack.c.bf16 %v899, %v895
    %v1016 = vpack.c.bf16 %v904, %v900
    %v1017 = vpack.c.bf16 %v905, %v901
    %v1018 = vpack.c.bf16 %v906, %v902
    %v1019 = vpack.c.bf16 %v907, %v903
    %v1020 = vpack.c.bf16 %v912, %v908
    %v1021 = vpack.c.bf16 %v913, %v909
    %v1022 = vpack.c.bf16 %v914, %v910
    %v1023 = vpack.c.bf16 %v915, %v911
    %v1024 = vpack.c.bf16 %v920, %v916
    %v1025 = vpack.c.bf16 %v921, %v917
    %v1026 = vpack.c.bf16 %v922, %v918
    %v1027 = vpack.c.bf16 %v923, %v919
    %v1028 = vpack.c.bf16 %v928, %v924
    %v1029 = vpack.c.bf16 %v929, %v925
    %v1030 = vpack.c.bf16 %v930, %v926
    %v1031 = vpack.c.bf16 %v931, %v927
    %v1032 = vpack.c.bf16 %v936, %v932
    %v1033 = vpack.c.bf16 %v937, %v933
    %v1034 = vpack.c.bf16 %v938, %v934
    %v1035 = vpack.c.bf16 %v939, %v935
    %v1036 = vpack.c.bf16 %v944, %v940
    %v1037 = vpack.c.bf16 %v945, %v941
    %v1038 = vpack.c.bf16 %v946, %v942
    %v1039 = vpack.c.bf16 %v947, %v943
    %v1040 = vpack.c.bf16 %v952, %v948
    %v1041 = vpack.c.bf16 %v953, %v949
    %v1042 = vpack.c.bf16 %v954, %v950
    %v1043 = vpack.c.bf16 %v955, %v951
    %v1044 = vpack.c.bf16 %v960, %v956
    %v1045 = vpack.c.bf16 %v961, %v957
    %v1046 = vpack.c.bf16 %v962, %v958
    %v1047 = vpack.c.bf16 %v963, %v959
    %v1048 = vpack.c.bf16 %v968, %v964
    %v1049 = vpack.c.bf16 %v969, %v965
    %v1050 = vpack.c.bf16 %v970, %v966
    %v1051 = vpack.c.bf16 %v971, %v967
    %v1052 = vpack.c.bf16 %v976, %v972
    %v1053 = vpack.c.bf16 %v977, %v973
    %v1054 = vpack.c.bf16 %v978, %v974
    %v1055 = vpack.c.bf16 %v979, %v975
    %v1056 = vld [vmem:[#allocation2] sm:$0xff]
    %v1057 = vld [vmem:[#allocation2 + $0x8] sm:$0xff]
    %v1058 = vld [vmem:[#allocation2 + $0x10] sm:$0xff]
    %v1059 = vld [vmem:[#allocation2 + $0x18] sm:$0xff]
    %v1060 = vld [vmem:[#allocation2 + $0x20] sm:$0xff]
    %v1061 = vld [vmem:[#allocation2 + $0x28] sm:$0xff]
    %v1062 = vld [vmem:[#allocation2 + $0x30] sm:$0xff]
    %v1063 = vld [vmem:[#allocation2 + $0x38] sm:$0xff]
    %v1064 = vld [vmem:[#allocation2 + $0x40] sm:$0xff]
    %v1065 = vld [vmem:[#allocation2 + $0x48] sm:$0xff]
    %v1066 = vld [vmem:[#allocation2 + $0x50] sm:$0xff]
    %v1067 = vld [vmem:[#allocation2 + $0x58] sm:$0xff]
    %v1068 = vld [vmem:[#allocation2 + $0x60] sm:$0xff]
    %v1069 = vld [vmem:[#allocation2 + $0x68] sm:$0xff]
    %v1070 = vld [vmem:[#allocation2 + $0x70] sm:$0xff]
    %v1071 = vld [vmem:[#allocation2 + $0x78] sm:$0xff]
    %v1072 = vld [vmem:[#allocation2 + $0x80] sm:$0xff]
    %v1073 = vld [vmem:[#allocation2 + $0x88] sm:$0xff]
    %v1074 = vld [vmem:[#allocation2 + $0x90] sm:$0xff]
    %v1075 = vld [vmem:[#allocation2 + $0x98] sm:$0xff]
    %v1076 = vld [vmem:[#allocation2 + $0xa0] sm:$0xff]
    %v1077 = vld [vmem:[#allocation2 + $0xa8] sm:$0xff]
    %v1078 = vld [vmem:[#allocation2 + $0xb0] sm:$0xff]
    %v1079 = vld [vmem:[#allocation2 + $0xb8] sm:$0xff]
    %v1080 = vld [vmem:[#allocation2 + $0xc0] sm:$0xff]
    %v1081 = vld [vmem:[#allocation2 + $0xc8] sm:$0xff]
    %v1082 = vld [vmem:[#allocation2 + $0xd0] sm:$0xff]
    %v1083 = vld [vmem:[#allocation2 + $0xd8] sm:$0xff]
    %v1084 = vld [vmem:[#allocation2 + $0xe0] sm:$0xff]
    %v1085 = vld [vmem:[#allocation2 + $0xe8] sm:$0xff]
    %v1086 = vld [vmem:[#allocation2 + $0xf0] sm:$0xff]
    %v1087 = vld [vmem:[#allocation2 + $0xf8] sm:$0xff]
    %v1088 = vld [vmem:[#allocation2 + $0x100] sm:$0xff]
    %v1089 = vld [vmem:[#allocation2 + $0x108] sm:$0xff]
    %v1090 = vld [vmem:[#allocation2 + $0x110] sm:$0xff]
    %v1091 = vld [vmem:[#allocation2 + $0x118] sm:$0xff]
    %v1092 = vld [vmem:[#allocation2 + $0x120] sm:$0xff]
    %v1093 = vld [vmem:[#allocation2 + $0x128] sm:$0xff]
    %v1094 = vld [vmem:[#allocation2 + $0x130] sm:$0xff]
    %v1095 = vld [vmem:[#allocation2 + $0x138] sm:$0xff]
    %v1096 = vld [vmem:[#allocation2 + $0x140] sm:$0xff]
    %v1097 = vld [vmem:[#allocation2 + $0x148] sm:$0xff]
    %v1098 = vld [vmem:[#allocation2 + $0x150] sm:$0xff]
    %v1099 = vld [vmem:[#allocation2 + $0x158] sm:$0xff]
    %v1100 = vld [vmem:[#allocation2 + $0x160] sm:$0xff]
    %v1101 = vld [vmem:[#allocation2 + $0x168] sm:$0xff]
    %v1102 = vld [vmem:[#allocation2 + $0x170] sm:$0xff]
    %v1103 = vld [vmem:[#allocation2 + $0x178] sm:$0xff]
    %v1104 = vld [vmem:[#allocation2 + $0x180] sm:$0xff]
    %v1105 = vld [vmem:[#allocation2 + $0x188] sm:$0xff]
    %v1106 = vld [vmem:[#allocation2 + $0x190] sm:$0xff]
    %v1107 = vld [vmem:[#allocation2 + $0x198] sm:$0xff]
    %v1108 = vld [vmem:[#allocation2 + $0x1a0] sm:$0xff]
    %v1109 = vld [vmem:[#allocation2 + $0x1a8] sm:$0xff]
    %v1110 = vld [vmem:[#allocation2 + $0x1b0] sm:$0xff]
    %v1111 = vld [vmem:[#allocation2 + $0x1b8] sm:$0xff]
    %v1112 = vld [vmem:[#allocation2 + $0x1c0] sm:$0xff]
    %v1113 = vld [vmem:[#allocation2 + $0x1c8] sm:$0xff]
    %v1114 = vld [vmem:[#allocation2 + $0x1d0] sm:$0xff]
    %v1115 = vld [vmem:[#allocation2 + $0x1d8] sm:$0xff]
    %v1116 = vld [vmem:[#allocation2 + $0x1e0] sm:$0xff]
    %v1117 = vld [vmem:[#allocation2 + $0x1e8] sm:$0xff]
    %v1118 = vld [vmem:[#allocation2 + $0x1f0] sm:$0xff]
    %v1119 = vld [vmem:[#allocation2 + $0x1f8] sm:$0xff]
    %v1120 = vld [vmem:[%s4] sm:$0x3]
    %v1121 = vunpack.c.l.bf16 %v1120
    %v1123 = vlaneseq
    %v1124 = vshrl.u32 %v1123, 7
    %v1125 = vsub.s32 0, %v1124
    %v1126 = vrot.slane %v1121, %v1125
    %v1127 = vlaneseq
    %v1128 = vshrl.u32 %v1127, 7
    %v1129 = vsub.s32 2, %v1128
    %v1130 = vrot.slane %v1121, %v1129
    %v1133 = vlaneseq
    %v1134 = vshrl.u32 %v1133, 7
    %v1135 = vsub.s32 0, %v1134
    %v1136 = vrot.slane %v1126, %v1135
    %v1137 = vlaneseq
    %v1138 = vshrl.u32 %v1137, 7
    %v1139 = vsub.s32 0, %v1138
    %v1140 = vrot.slane %v1130, %v1139
    %v1205 = vunpack.c.l.b16 %v1056
    %v1206 = vunpack.c.h.b16 %v1056
    %v1207 = vunpack.c.l.b16 %v1057
    %v1208 = vunpack.c.h.b16 %v1057
    %v1209 = vunpack.c.l.b16 %v1058
    %v1210 = vunpack.c.h.b16 %v1058
    %v1211 = vunpack.c.l.b16 %v1059
    %v1212 = vunpack.c.h.b16 %v1059
    %v1213 = vunpack.c.l.b16 %v1060
    %v1214 = vunpack.c.h.b16 %v1060
    %v1215 = vunpack.c.l.b16 %v1061
    %v1216 = vunpack.c.h.b16 %v1061
    %v1217 = vunpack.c.l.b16 %v1062
    %v1218 = vunpack.c.h.b16 %v1062
    %v1219 = vunpack.c.l.b16 %v1063
    %v1220 = vunpack.c.h.b16 %v1063
    %v1221 = vunpack.c.l.b16 %v1064
    %v1222 = vunpack.c.h.b16 %v1064
    %v1223 = vunpack.c.l.b16 %v1065
    %v1224 = vunpack.c.h.b16 %v1065
    %v1225 = vunpack.c.l.b16 %v1066
    %v1226 = vunpack.c.h.b16 %v1066
    %v1227 = vunpack.c.l.b16 %v1067
    %v1228 = vunpack.c.h.b16 %v1067
    %v1229 = vunpack.c.l.b16 %v1068
    %v1230 = vunpack.c.h.b16 %v1068
    %v1231 = vunpack.c.l.b16 %v1069
    %v1232 = vunpack.c.h.b16 %v1069
    %v1233 = vunpack.c.l.b16 %v1070
    %v1234 = vunpack.c.h.b16 %v1070
    %v1235 = vunpack.c.l.b16 %v1071
    %v1236 = vunpack.c.h.b16 %v1071
    %v1237 = vunpack.c.l.b16 %v1072
    %v1238 = vunpack.c.h.b16 %v1072
    %v1239 = vunpack.c.l.b16 %v1073
    %v1240 = vunpack.c.h.b16 %v1073
    %v1241 = vunpack.c.l.b16 %v1074
    %v1242 = vunpack.c.h.b16 %v1074
    %v1243 = vunpack.c.l.b16 %v1075
    %v1244 = vunpack.c.h.b16 %v1075
    %v1245 = vunpack.c.l.b16 %v1076
    %v1246 = vunpack.c.h.b16 %v1076
    %v1247 = vunpack.c.l.b16 %v1077
    %v1248 = vunpack.c.h.b16 %v1077
    %v1249 = vunpack.c.l.b16 %v1078
    %v1250 = vunpack.c.h.b16 %v1078
    %v1251 = vunpack.c.l.b16 %v1079
    %v1252 = vunpack.c.h.b16 %v1079
    %v1253 = vunpack.c.l.b16 %v1080
    %v1254 = vunpack.c.h.b16 %v1080
    %v1255 = vunpack.c.l.b16 %v1081
    %v1256 = vunpack.c.h.b16 %v1081
    %v1257 = vunpack.c.l.b16 %v1082
    %v1258 = vunpack.c.h.b16 %v1082
    %v1259 = vunpack.c.l.b16 %v1083
    %v1260 = vunpack.c.h.b16 %v1083
    %v1261 = vunpack.c.l.b16 %v1084
    %v1262 = vunpack.c.h.b16 %v1084
    %v1263 = vunpack.c.l.b16 %v1085
    %v1264 = vunpack.c.h.b16 %v1085
    %v1265 = vunpack.c.l.b16 %v1086
    %v1266 = vunpack.c.h.b16 %v1086
    %v1267 = vunpack.c.l.b16 %v1087
    %v1268 = vunpack.c.h.b16 %v1087
    %v1269 = vunpack.c.l.b16 %v1088
    %v1270 = vunpack.c.h.b16 %v1088
    %v1271 = vunpack.c.l.b16 %v1089
    %v1272 = vunpack.c.h.b16 %v1089
    %v1273 = vunpack.c.l.b16 %v1090
    %v1274 = vunpack.c.h.b16 %v1090
    %v1275 = vunpack.c.l.b16 %v1091
    %v1276 = vunpack.c.h.b16 %v1091
    %v1277 = vunpack.c.l.b16 %v1092
    %v1278 = vunpack.c.h.b16 %v1092
    %v1279 = vunpack.c.l.b16 %v1093
    %v1280 = vunpack.c.h.b16 %v1093
    %v1281 = vunpack.c.l.b16 %v1094
    %v1282 = vunpack.c.h.b16 %v1094
    %v1283 = vunpack.c.l.b16 %v1095
    %v1284 = vunpack.c.h.b16 %v1095
    %v1285 = vunpack.c.l.b16 %v1096
    %v1286 = vunpack.c.h.b16 %v1096
    %v1287 = vunpack.c.l.b16 %v1097
    %v1288 = vunpack.c.h.b16 %v1097
    %v1289 = vunpack.c.l.b16 %v1098
    %v1290 = vunpack.c.h.b16 %v1098
    %v1291 = vunpack.c.l.b16 %v1099
    %v1292 = vunpack.c.h.b16 %v1099
    %v1293 = vunpack.c.l.b16 %v1100
    %v1294 = vunpack.c.h.b16 %v1100
    %v1295 = vunpack.c.l.b16 %v1101
    %v1296 = vunpack.c.h.b16 %v1101
    %v1297 = vunpack.c.l.b16 %v1102
    %v1298 = vunpack.c.h.b16 %v1102
    %v1299 = vunpack.c.l.b16 %v1103
    %v1300 = vunpack.c.h.b16 %v1103
    %v1301 = vunpack.c.l.b16 %v1104
    %v1302 = vunpack.c.h.b16 %v1104
    %v1303 = vunpack.c.l.b16 %v1105
    %v1304 = vunpack.c.h.b16 %v1105
    %v1305 = vunpack.c.l.b16 %v1106
    %v1306 = vunpack.c.h.b16 %v1106
    %v1307 = vunpack.c.l.b16 %v1107
    %v1308 = vunpack.c.h.b16 %v1107
    %v1309 = vunpack.c.l.b16 %v1108
    %v1310 = vunpack.c.h.b16 %v1108
    %v1311 = vunpack.c.l.b16 %v1109
    %v1312 = vunpack.c.h.b16 %v1109
    %v1313 = vunpack.c.l.b16 %v1110
    %v1314 = vunpack.c.h.b16 %v1110
    %v1315 = vunpack.c.l.b16 %v1111
    %v1316 = vunpack.c.h.b16 %v1111
    %v1317 = vunpack.c.l.b16 %v1112
    %v1318 = vunpack.c.h.b16 %v1112
    %v1319 = vunpack.c.l.b16 %v1113
    %v1320 = vunpack.c.h.b16 %v1113
    %v1321 = vunpack.c.l.b16 %v1114
    %v1322 = vunpack.c.h.b16 %v1114
    %v1323 = vunpack.c.l.b16 %v1115
    %v1324 = vunpack.c.h.b16 %v1115
    %v1325 = vunpack.c.l.b16 %v1116
    %v1326 = vunpack.c.h.b16 %v1116
    %v1327 = vunpack.c.l.b16 %v1117
    %v1328 = vunpack.c.h.b16 %v1117
    %v1329 = vunpack.c.l.b16 %v1118
    %v1330 = vunpack.c.h.b16 %v1118
    %v1331 = vunpack.c.l.b16 %v1119
    %v1332 = vunpack.c.h.b16 %v1119
    %v1333 = vpack.c.b16 %v1207, %v1205
    %v1334 = vpack.c.b16 %v1208, %v1206
    %v1335 = vpack.c.b16 %v1211, %v1209
    %v1336 = vpack.c.b16 %v1212, %v1210
    %v1337 = vpack.c.b16 %v1215, %v1213
    %v1338 = vpack.c.b16 %v1216, %v1214
    %v1339 = vpack.c.b16 %v1219, %v1217
    %v1340 = vpack.c.b16 %v1220, %v1218
    %v1341 = vpack.c.b16 %v1223, %v1221
    %v1342 = vpack.c.b16 %v1224, %v1222
    %v1343 = vpack.c.b16 %v1227, %v1225
    %v1344 = vpack.c.b16 %v1228, %v1226
    %v1345 = vpack.c.b16 %v1231, %v1229
    %v1346 = vpack.c.b16 %v1232, %v1230
    %v1347 = vpack.c.b16 %v1235, %v1233
    %v1348 = vpack.c.b16 %v1236, %v1234
    %v1349 = vpack.c.b16 %v1239, %v1237
    %v1350 = vpack.c.b16 %v1240, %v1238
    %v1351 = vpack.c.b16 %v1243, %v1241
    %v1352 = vpack.c.b16 %v1244, %v1242
    %v1353 = vpack.c.b16 %v1247, %v1245
    %v1354 = vpack.c.b16 %v1248, %v1246
    %v1355 = vpack.c.b16 %v1251, %v1249
    %v1356 = vpack.c.b16 %v1252, %v1250
    %v1357 = vpack.c.b16 %v1255, %v1253
    %v1358 = vpack.c.b16 %v1256, %v1254
    %v1359 = vpack.c.b16 %v1259, %v1257
    %v1360 = vpack.c.b16 %v1260, %v1258
    %v1361 = vpack.c.b16 %v1263, %v1261
    %v1362 = vpack.c.b16 %v1264, %v1262
    %v1363 = vpack.c.b16 %v1267, %v1265
    %v1364 = vpack.c.b16 %v1268, %v1266
    %v1365 = vpack.c.b16 %v1271, %v1269
    %v1366 = vpack.c.b16 %v1272, %v1270
    %v1367 = vpack.c.b16 %v1275, %v1273
    %v1368 = vpack.c.b16 %v1276, %v1274
    %v1369 = vpack.c.b16 %v1279, %v1277
    %v1370 = vpack.c.b16 %v1280, %v1278
    %v1371 = vpack.c.b16 %v1283, %v1281
    %v1372 = vpack.c.b16 %v1284, %v1282
    %v1373 = vpack.c.b16 %v1287, %v1285
    %v1374 = vpack.c.b16 %v1288, %v1286
    %v1375 = vpack.c.b16 %v1291, %v1289
    %v1376 = vpack.c.b16 %v1292, %v1290
    %v1377 = vpack.c.b16 %v1295, %v1293
    %v1378 = vpack.c.b16 %v1296, %v1294
    %v1379 = vpack.c.b16 %v1299, %v1297
    %v1380 = vpack.c.b16 %v1300, %v1298
    %v1381 = vpack.c.b16 %v1303, %v1301
    %v1382 = vpack.c.b16 %v1304, %v1302
    %v1383 = vpack.c.b16 %v1307, %v1305
    %v1384 = vpack.c.b16 %v1308, %v1306
    %v1385 = vpack.c.b16 %v1311, %v1309
    %v1386 = vpack.c.b16 %v1312, %v1310
    %v1387 = vpack.c.b16 %v1315, %v1313
    %v1388 = vpack.c.b16 %v1316, %v1314
    %v1389 = vpack.c.b16 %v1319, %v1317
    %v1390 = vpack.c.b16 %v1320, %v1318
    %v1391 = vpack.c.b16 %v1323, %v1321
    %v1392 = vpack.c.b16 %v1324, %v1322
    %v1393 = vpack.c.b16 %v1327, %v1325
    %v1394 = vpack.c.b16 %v1328, %v1326
    %v1395 = vpack.c.b16 %v1331, %v1329
    %v1396 = vpack.c.b16 %v1332, %v1330
    %1461 = vmatprep.subr.bf16.mxu0 %v1334
    %1462 = vmatpush1.bf16.msra.mxu0 %v1333
    %1463 = vmatprep.subr.bf16.mxu0 %v1336
    %1464 = vmatpush1.bf16.msra.mxu0 %v1335
    %1465 = vmatprep.subr.bf16.mxu0 %v1338
    %1466 = vmatpush1.bf16.msra.mxu0 %v1337
    %1467 = vmatprep.subr.bf16.mxu0 %v1340
    %1468 = vmatpush1.bf16.msra.mxu0 %v1339
    %1469 = vmatprep.subr.bf16.mxu0 %v1342
    %1470 = vmatpush1.bf16.msra.mxu0 %v1341
    %1471 = vmatprep.subr.bf16.mxu0 %v1344
    %1472 = vmatpush1.bf16.msra.mxu0 %v1343
    %1473 = vmatprep.subr.bf16.mxu0 %v1346
    %1474 = vmatpush1.bf16.msra.mxu0 %v1345
    %1475 = vmatprep.subr.bf16.mxu0 %v1348
    %1476 = vmatpush1.bf16.msra.mxu0 %v1347
    %1477 = vmatprep.subr.bf16.mxu0 %v1350
    %1478 = vmatpush1.bf16.msra.mxu0 %v1349
    %1479 = vmatprep.subr.bf16.mxu0 %v1352
    %1480 = vmatpush1.bf16.msra.mxu0 %v1351
    %1481 = vmatprep.subr.bf16.mxu0 %v1354
    %1482 = vmatpush1.bf16.msra.mxu0 %v1353
    %1483 = vmatprep.subr.bf16.mxu0 %v1356
    %1484 = vmatpush1.bf16.msra.mxu0 %v1355
    %1485 = vmatprep.subr.bf16.mxu0 %v1358
    %1486 = vmatpush1.bf16.msra.mxu0 %v1357
    %1487 = vmatprep.subr.bf16.mxu0 %v1360
    %1488 = vmatpush1.bf16.msra.mxu0 %v1359
    %1489 = vmatprep.subr.bf16.mxu0 %v1362
    %1490 = vmatpush1.bf16.msra.mxu0 %v1361
    %1491 = vmatprep.subr.bf16.mxu0 %v1364
    %1492 = vmatpush1.bf16.msra.mxu0 %v1363
    %1493 = vmatprep.mubr.bf16.mxu0 %v981
    %1494 = vmatmul.mubr.bf16.gmra.mrb[0].mxu0 %v980
    %v1495 = vpop.f32.mrb[0].mxu0
    %v1496 = vadd.f32 %v1136, %v1495
    %v1497 = vpop.f32.mrb[0].mxu0
    %v1498 = vadd.f32 %v1140, %v1497
    %v1499 = vpop.f32.mrb[0].mxu0
    %v1500 = vadd.f32 %v1136, %v1499
    %v1501 = vpop.f32.mrb[0].mxu0
    %v1502 = vadd.f32 %v1140, %v1501
    %1503 = vmatprep.mubr.bf16.mxu0 %v985
    %1504 = vmatmul.mubr.bf16.gmra.mrb[0].mxu0 %v984
    %v1505 = vpop.f32.mrb[0].mxu0
    %v1506 = vadd.f32 %v1136, %v1505
    %v1507 = vpop.f32.mrb[0].mxu0
    %v1508 = vadd.f32 %v1140, %v1507
    %v1509 = vpop.f32.mrb[0].mxu0
    %v1510 = vadd.f32 %v1136, %v1509
    %v1511 = vpop.f32.mrb[0].mxu0
    %v1512 = vadd.f32 %v1140, %v1511
    %1513 = vmatprep.mubr.bf16.mxu0 %v989
    %1514 = vmatmul.mubr.bf16.gmra.mrb[0].mxu0 %v988
    %v1515 = vpop.f32.mrb[0].mxu0
    %v1516 = vadd.f32 %v1136, %v1515
    %v1517 = vpop.f32.mrb[0].mxu0
    %v1518 = vadd.f32 %v1140, %v1517
    %v1519 = vpop.f32.mrb[0].mxu0
    %v1520 = vadd.f32 %v1136, %v1519
    %v1521 = vpop.f32.mrb[0].mxu0
    %v1522 = vadd.f32 %v1140, %v1521
    %1523 = vmatprep.mubr.bf16.mxu0 %v993
    %1524 = vmatmul.mubr.bf16.gmra.mrb[0].mxu0 %v992
    %v1525 = vpop.f32.mrb[0].mxu0
    %v1526 = vadd.f32 %v1136, %v1525
    %v1527 = vpop.f32.mrb[0].mxu0
    %v1528 = vadd.f32 %v1140, %v1527
    %v1529 = vpop.f32.mrb[0].mxu0
    %v1530 = vadd.f32 %v1136, %v1529
    %v1531 = vpop.f32.mrb[0].mxu0
    %v1532 = vadd.f32 %v1140, %v1531
    %1533 = vmatprep.mubr.bf16.mxu0 %v997
    %1534 = vmatmul.mubr.bf16.gmra.mrb[0].mxu0 %v996
    %v1535 = vpop.f32.mrb[0].mxu0
    %v1536 = vadd.f32 %v1136, %v1535
    %v1537 = vpop.f32.mrb[0].mxu0
    %v1538 = vadd.f32 %v1140, %v1537
    %v1539 = vpop.f32.mrb[0].mxu0
    %v1540 = vadd.f32 %v1136, %v1539
    %v1541 = vpop.f32.mrb[0].mxu0
    %v1542 = vadd.f32 %v1140, %v1541
    %1543 = vmatprep.mubr.bf16.mxu0 %v1001
    %1544 = vmatmul.mubr.bf16.gmra.mrb[0].mxu0 %v1000
    %v1545 = vpop.f32.mrb[0].mxu0
    %v1546 = vadd.f32 %v1136, %v1545
    %v1547 = vpop.f32.mrb[0].mxu0
    %v1548 = vadd.f32 %v1140, %v1547
    %v1549 = vpop.f32.mrb[0].mxu0
    %v1550 = vadd.f32 %v1136, %v1549
    %v1551 = vpop.f32.mrb[0].mxu0
    %v1552 = vadd.f32 %v1140, %v1551
    %1553 = vmatprep.mubr.bf16.mxu0 %v1005
    %1554 = vmatmul.mubr.bf16.gmra.mrb[0].mxu0 %v1004
    %v1555 = vpop.f32.mrb[0].mxu0
    %v1556 = vadd.f32 %v1136, %v1555
    %v1557 = vpop.f32.mrb[0].mxu0
    %v1558 = vadd.f32 %v1140, %v1557
    %v1559 = vpop.f32.mrb[0].mxu0
    %v1560 = vadd.f32 %v1136, %v1559
    %v1561 = vpop.f32.mrb[0].mxu0
    %v1562 = vadd.f32 %v1140, %v1561
    %1563 = vmatprep.mubr.bf16.mxu0 %v1009
    %1564 = vmatmul.mubr.bf16.gmra.mrb[0].mxu0 %v1008
    %v1565 = vpop.f32.mrb[0].mxu0
    %v1566 = vadd.f32 %v1136, %v1565
    %v1567 = vpop.f32.mrb[0].mxu0
    %v1568 = vadd.f32 %v1140, %v1567
    %v1569 = vpop.f32.mrb[0].mxu0
    %v1570 = vadd.f32 %v1136, %v1569
    %v1571 = vpop.f32.mrb[0].mxu0
    %v1572 = vadd.f32 %v1140, %v1571
    %1573 = vmatprep.mubr.bf16.mxu0 %v1013
    %1574 = vmatmul.mubr.bf16.gmra.mrb[0].mxu0 %v1012
    %v1575 = vpop.f32.mrb[0].mxu0
    %v1576 = vadd.f32 %v1136, %v1575
    %v1577 = vpop.f32.mrb[0].mxu0
    %v1578 = vadd.f32 %v1140, %v1577
    %v1579 = vpop.f32.mrb[0].mxu0
    %v1580 = vadd.f32 %v1136, %v1579
    %v1581 = vpop.f32.mrb[0].mxu0
    %v1582 = vadd.f32 %v1140, %v1581
    %1583 = vmatprep.mubr.bf16.mxu0 %v1017
    %1584 = vmatmul.mubr.bf16.gmra.mrb[0].mxu0 %v1016
    %v1585 = vpop.f32.mrb[0].mxu0
    %v1586 = vadd.f32 %v1136, %v1585
    %v1587 = vpop.f32.mrb[0].mxu0
    %v1588 = vadd.f32 %v1140, %v1587
    %v1589 = vpop.f32.mrb[0].mxu0
    %v1590 = vadd.f32 %v1136, %v1589
    %v1591 = vpop.f32.mrb[0].mxu0
    %v1592 = vadd.f32 %v1140, %v1591
    %1593 = vmatprep.mubr.bf16.mxu0 %v1021
    %1594 = vmatmul.mubr.bf16.gmra.mrb[0].mxu0 %v1020
    %v1595 = vpop.f32.mrb[0].mxu0
    %v1596 = vadd.f32 %v1136, %v1595
    %v1597 = vpop.f32.mrb[0].mxu0
    %v1598 = vadd.f32 %v1140, %v1597
    %v1599 = vpop.f32.mrb[0].mxu0
    %v1600 = vadd.f32 %v1136, %v1599
    %v1601 = vpop.f32.mrb[0].mxu0
    %v1602 = vadd.f32 %v1140, %v1601
    %1603 = vmatprep.mubr.bf16.mxu0 %v1025
    %1604 = vmatmul.mubr.bf16.gmra.mrb[0].mxu0 %v1024
    %v1605 = vpop.f32.mrb[0].mxu0
    %v1606 = vadd.f32 %v1136, %v1605
    %v1607 = vpop.f32.mrb[0].mxu0
    %v1608 = vadd.f32 %v1140, %v1607
    %v1609 = vpop.f32.mrb[0].mxu0
    %v1610 = vadd.f32 %v1136, %v1609
    %v1611 = vpop.f32.mrb[0].mxu0
    %v1612 = vadd.f32 %v1140, %v1611
    %1613 = vmatprep.mubr.bf16.mxu0 %v1029
    %1614 = vmatmul.mubr.bf16.gmra.mrb[0].mxu0 %v1028
    %v1615 = vpop.f32.mrb[0].mxu0
    %v1616 = vadd.f32 %v1136, %v1615
    %v1617 = vpop.f32.mrb[0].mxu0
    %v1618 = vadd.f32 %v1140, %v1617
    %v1619 = vpop.f32.mrb[0].mxu0
    %v1620 = vadd.f32 %v1136, %v1619
    %v1621 = vpop.f32.mrb[0].mxu0
    %v1622 = vadd.f32 %v1140, %v1621
    %1623 = vmatprep.mubr.bf16.mxu0 %v1033
    %1624 = vmatmul.mubr.bf16.gmra.mrb[0].mxu0 %v1032
    %v1625 = vpop.f32.mrb[0].mxu0
    %v1626 = vadd.f32 %v1136, %v1625
    %v1627 = vpop.f32.mrb[0].mxu0
    %v1628 = vadd.f32 %v1140, %v1627
    %v1629 = vpop.f32.mrb[0].mxu0
    %v1630 = vadd.f32 %v1136, %v1629
    %v1631 = vpop.f32.mrb[0].mxu0
    %v1632 = vadd.f32 %v1140, %v1631
    %1633 = vmatprep.mubr.bf16.mxu0 %v1037
    %1634 = vmatmul.mubr.bf16.gmra.mrb[0].mxu0 %v1036
    %v1635 = vpop.f32.mrb[0].mxu0
    %v1636 = vadd.f32 %v1136, %v1635
    %v1637 = vpop.f32.mrb[0].mxu0
    %v1638 = vadd.f32 %v1140, %v1637
    %v1639 = vpop.f32.mrb[0].mxu0
    %v1640 = vadd.f32 %v1136, %v1639
    %v1641 = vpop.f32.mrb[0].mxu0
    %v1642 = vadd.f32 %v1140, %v1641
    %1643 = vmatprep.mubr.bf16.mxu0 %v1041
    %1644 = vmatmul.mubr.bf16.gmra.mrb[0].mxu0 %v1040
    %v1645 = vpop.f32.mrb[0].mxu0
    %v1646 = vadd.f32 %v1136, %v1645
    %v1647 = vpop.f32.mrb[0].mxu0
    %v1648 = vadd.f32 %v1140, %v1647
    %v1649 = vpop.f32.mrb[0].mxu0
    %v1650 = vadd.f32 %v1136, %v1649
    %v1651 = vpop.f32.mrb[0].mxu0
    %v1652 = vadd.f32 %v1140, %v1651
    %1653 = vmatprep.mubr.bf16.mxu0 %v1045
    %1654 = vmatmul.mubr.bf16.gmra.mrb[0].mxu0 %v1044
    %v1655 = vpop.f32.mrb[0].mxu0
    %v1656 = vadd.f32 %v1136, %v1655
    %v1657 = vpop.f32.mrb[0].mxu0
    %v1658 = vadd.f32 %v1140, %v1657
    %v1659 = vpop.f32.mrb[0].mxu0
    %v1660 = vadd.f32 %v1136, %v1659
    %v1661 = vpop.f32.mrb[0].mxu0
    %v1662 = vadd.f32 %v1140, %v1661
    %1663 = vmatprep.mubr.bf16.mxu0 %v1049
    %1664 = vmatmul.mubr.bf16.gmra.mrb[0].mxu0 %v1048
    %v1665 = vpop.f32.mrb[0].mxu0
    %v1666 = vadd.f32 %v1136, %v1665
    %v1667 = vpop.f32.mrb[0].mxu0
    %v1668 = vadd.f32 %v1140, %v1667
    %v1669 = vpop.f32.mrb[0].mxu0
    %v1670 = vadd.f32 %v1136, %v1669
    %v1671 = vpop.f32.mrb[0].mxu0
    %v1672 = vadd.f32 %v1140, %v1671
    %1673 = vmatprep.mubr.bf16.mxu0 %v1053
    %1674 = vmatmul.mubr.bf16.gmra.mrb[0].mxu0 %v1052
    %v1675 = vpop.f32.mrb[0].mxu0
    %v1676 = vadd.f32 %v1136, %v1675
    %v1677 = vpop.f32.mrb[0].mxu0
    %v1678 = vadd.f32 %v1140, %v1677
    %v1679 = vpop.f32.mrb[0].mxu0
    %v1680 = vadd.f32 %v1136, %v1679
    %v1681 = vpop.f32.mrb[0].mxu0
    %v1682 = vadd.f32 %v1140, %v1681
    %1683 = vdwg.mxu0
    %1684 = vmatprep.subr.bf16.mxu0 %v1366
    %1685 = vmatpush1.bf16.msra.mxu0 %v1365
    %1686 = vmatprep.subr.bf16.mxu0 %v1368
    %1687 = vmatpush1.bf16.msra.mxu0 %v1367
    %1688 = vmatprep.subr.bf16.mxu0 %v1370
    %1689 = vmatpush1.bf16.msra.mxu0 %v1369
    %1690 = vmatprep.subr.bf16.mxu0 %v1372
    %1691 = vmatpush1.bf16.msra.mxu0 %v1371
    %1692 = vmatprep.subr.bf16.mxu0 %v1374
    %1693 = vmatpush1.bf16.msra.mxu0 %v1373
    %1694 = vmatprep.subr.bf16.mxu0 %v1376
    %1695 = vmatpush1.bf16.msra.mxu0 %v1375
    %1696 = vmatprep.subr.bf16.mxu0 %v1378
    %1697 = vmatpush1.bf16.msra.mxu0 %v1377
    %1698 = vmatprep.subr.bf16.mxu0 %v1380
    %1699 = vmatpush1.bf16.msra.mxu0 %v1379
    %1700 = vmatprep.subr.bf16.mxu0 %v1382
    %1701 = vmatpush1.bf16.msra.mxu0 %v1381
    %1702 = vmatprep.subr.bf16.mxu0 %v1384
    %1703 = vmatpush1.bf16.msra.mxu0 %v1383
    %1704 = vmatprep.subr.bf16.mxu0 %v1386
    %1705 = vmatpush1.bf16.msra.mxu0 %v1385
    %1706 = vmatprep.subr.bf16.mxu0 %v1388
    %1707 = vmatpush1.bf16.msra.mxu0 %v1387
    %1708 = vmatprep.subr.bf16.mxu0 %v1390
    %1709 = vmatpush1.bf16.msra.mxu0 %v1389
    %1710 = vmatprep.subr.bf16.mxu0 %v1392
    %1711 = vmatpush1.bf16.msra.mxu0 %v1391
    %1712 = vmatprep.subr.bf16.mxu0 %v1394
    %1713 = vmatpush1.bf16.msra.mxu0 %v1393
    %1714 = vmatprep.subr.bf16.mxu0 %v1396
    %1715 = vmatpush1.bf16.msra.mxu0 %v1395
    %1716 = vmatprep.mubr.bf16.mxu0 %v983
    %1717 = vmatmul.mubr.bf16.gmra.mrb[0].mxu0 %v982
    %v1718 = vpop.f32.mrb[0].mxu0
    %v1719 = vadd.f32 %v1496, %v1718
    %v1720 = vpop.f32.mrb[0].mxu0
    %v1721 = vadd.f32 %v1498, %v1720
    %v1722 = vpop.f32.mrb[0].mxu0
    %v1723 = vadd.f32 %v1500, %v1722
    %v1724 = vpop.f32.mrb[0].mxu0
    %v1725 = vadd.f32 %v1502, %v1724
    %1726 = vmatprep.mubr.bf16.mxu0 %v987
    %1727 = vmatmul.mubr.bf16.gmra.mrb[0].mxu0 %v986
    %v1728 = vpop.f32.mrb[0].mxu0
    %v1729 = vadd.f32 %v1506, %v1728
    %v1730 = vpop.f32.mrb[0].mxu0
    %v1731 = vadd.f32 %v1508, %v1730
    %v1732 = vpop.f32.mrb[0].mxu0
    %v1733 = vadd.f32 %v1510, %v1732
    %v1734 = vpop.f32.mrb[0].mxu0
    %v1735 = vadd.f32 %v1512, %v1734
    %1736 = vmatprep.mubr.bf16.mxu0 %v991
    %1737 = vmatmul.mubr.bf16.gmra.mrb[0].mxu0 %v990
    %v1738 = vpop.f32.mrb[0].mxu0
    %v1739 = vadd.f32 %v1516, %v1738
    %v1740 = vpop.f32.mrb[0].mxu0
    %v1741 = vadd.f32 %v1518, %v1740
    %v1742 = vpop.f32.mrb[0].mxu0
    %v1743 = vadd.f32 %v1520, %v1742
    %v1744 = vpop.f32.mrb[0].mxu0
    %v1745 = vadd.f32 %v1522, %v1744
    %1746 = vmatprep.mubr.bf16.mxu0 %v995
    %1747 = vmatmul.mubr.bf16.gmra.mrb[0].mxu0 %v994
    %v1748 = vpop.f32.mrb[0].mxu0
    %v1749 = vadd.f32 %v1526, %v1748
    %v1750 = vpop.f32.mrb[0].mxu0
    %v1751 = vadd.f32 %v1528, %v1750
    %v1752 = vpop.f32.mrb[0].mxu0
    %v1753 = vadd.f32 %v1530, %v1752
    %v1754 = vpop.f32.mrb[0].mxu0
    %v1755 = vadd.f32 %v1532, %v1754
    %1756 = vmatprep.mubr.bf16.mxu0 %v999
    %1757 = vmatmul.mubr.bf16.gmra.mrb[0].mxu0 %v998
    %v1758 = vpop.f32.mrb[0].mxu0
    %v1759 = vadd.f32 %v1536, %v1758
    %v1760 = vpop.f32.mrb[0].mxu0
    %v1761 = vadd.f32 %v1538, %v1760
    %v1762 = vpop.f32.mrb[0].mxu0
    %v1763 = vadd.f32 %v1540, %v1762
    %v1764 = vpop.f32.mrb[0].mxu0
    %v1765 = vadd.f32 %v1542, %v1764
    %1766 = vmatprep.mubr.bf16.mxu0 %v1003
    %1767 = vmatmul.mubr.bf16.gmra.mrb[0].mxu0 %v1002
    %v1768 = vpop.f32.mrb[0].mxu0
    %v1769 = vadd.f32 %v1546, %v1768
    %v1770 = vpop.f32.mrb[0].mxu0
    %v1771 = vadd.f32 %v1548, %v1770
    %v1772 = vpop.f32.mrb[0].mxu0
    %v1773 = vadd.f32 %v1550, %v1772
    %v1774 = vpop.f32.mrb[0].mxu0
    %v1775 = vadd.f32 %v1552, %v1774
    %1776 = vmatprep.mubr.bf16.mxu0 %v1007
    %1777 = vmatmul.mubr.bf16.gmra.mrb[0].mxu0 %v1006
    %v1778 = vpop.f32.mrb[0].mxu0
    %v1779 = vadd.f32 %v1556, %v1778
    %v1780 = vpop.f32.mrb[0].mxu0
    %v1781 = vadd.f32 %v1558, %v1780
    %v1782 = vpop.f32.mrb[0].mxu0
    %v1783 = vadd.f32 %v1560, %v1782
    %v1784 = vpop.f32.mrb[0].mxu0
    %v1785 = vadd.f32 %v1562, %v1784
    %1786 = vmatprep.mubr.bf16.mxu0 %v1011
    %1787 = vmatmul.mubr.bf16.gmra.mrb[0].mxu0 %v1010
    %v1788 = vpop.f32.mrb[0].mxu0
    %v1789 = vadd.f32 %v1566, %v1788
    %v1790 = vpop.f32.mrb[0].mxu0
    %v1791 = vadd.f32 %v1568, %v1790
    %v1792 = vpop.f32.mrb[0].mxu0
    %v1793 = vadd.f32 %v1570, %v1792
    %v1794 = vpop.f32.mrb[0].mxu0
    %v1795 = vadd.f32 %v1572, %v1794
    %1796 = vmatprep.mubr.bf16.mxu0 %v1015
    %1797 = vmatmul.mubr.bf16.gmra.mrb[0].mxu0 %v1014
    %v1798 = vpop.f32.mrb[0].mxu0
    %v1799 = vadd.f32 %v1576, %v1798
    %v1800 = vpop.f32.mrb[0].mxu0
    %v1801 = vadd.f32 %v1578, %v1800
    %v1802 = vpop.f32.mrb[0].mxu0
    %v1803 = vadd.f32 %v1580, %v1802
    %v1804 = vpop.f32.mrb[0].mxu0
    %v1805 = vadd.f32 %v1582, %v1804
    %1806 = vmatprep.mubr.bf16.mxu0 %v1019
    %1807 = vmatmul.mubr.bf16.gmra.mrb[0].mxu0 %v1018
    %v1808 = vpop.f32.mrb[0].mxu0
    %v1809 = vadd.f32 %v1586, %v1808
    %v1810 = vpop.f32.mrb[0].mxu0
    %v1811 = vadd.f32 %v1588, %v1810
    %v1812 = vpop.f32.mrb[0].mxu0
    %v1813 = vadd.f32 %v1590, %v1812
    %v1814 = vpop.f32.mrb[0].mxu0
    %v1815 = vadd.f32 %v1592, %v1814
    %1816 = vmatprep.mubr.bf16.mxu0 %v1023
    %1817 = vmatmul.mubr.bf16.gmra.mrb[0].mxu0 %v1022
    %v1818 = vpop.f32.mrb[0].mxu0
    %v1819 = vadd.f32 %v1596, %v1818
    %v1820 = vpop.f32.mrb[0].mxu0
    %v1821 = vadd.f32 %v1598, %v1820
    %v1822 = vpop.f32.mrb[0].mxu0
    %v1823 = vadd.f32 %v1600, %v1822
    %v1824 = vpop.f32.mrb[0].mxu0
    %v1825 = vadd.f32 %v1602, %v1824
    %1826 = vmatprep.mubr.bf16.mxu0 %v1027
    %1827 = vmatmul.mubr.bf16.gmra.mrb[0].mxu0 %v1026
    %v1828 = vpop.f32.mrb[0].mxu0
    %v1829 = vadd.f32 %v1606, %v1828
    %v1830 = vpop.f32.mrb[0].mxu0
    %v1831 = vadd.f32 %v1608, %v1830
    %v1832 = vpop.f32.mrb[0].mxu0
    %v1833 = vadd.f32 %v1610, %v1832
    %v1834 = vpop.f32.mrb[0].mxu0
    %v1835 = vadd.f32 %v1612, %v1834
    %1836 = vmatprep.mubr.bf16.mxu0 %v1031
    %1837 = vmatmul.mubr.bf16.gmra.mrb[0].mxu0 %v1030
    %v1838 = vpop.f32.mrb[0].mxu0
    %v1839 = vadd.f32 %v1616, %v1838
    %v1840 = vpop.f32.mrb[0].mxu0
    %v1841 = vadd.f32 %v1618, %v1840
    %v1842 = vpop.f32.mrb[0].mxu0
    %v1843 = vadd.f32 %v1620, %v1842
    %v1844 = vpop.f32.mrb[0].mxu0
    %v1845 = vadd.f32 %v1622, %v1844
    %1846 = vmatprep.mubr.bf16.mxu0 %v1035
    %1847 = vmatmul.mubr.bf16.gmra.mrb[0].mxu0 %v1034
    %v1848 = vpop.f32.mrb[0].mxu0
    %v1849 = vadd.f32 %v1626, %v1848
    %v1850 = vpop.f32.mrb[0].mxu0
    %v1851 = vadd.f32 %v1628, %v1850
    %v1852 = vpop.f32.mrb[0].mxu0
    %v1853 = vadd.f32 %v1630, %v1852
    %v1854 = vpop.f32.mrb[0].mxu0
    %v1855 = vadd.f32 %v1632, %v1854
    %1856 = vmatprep.mubr.bf16.mxu0 %v1039
    %1857 = vmatmul.mubr.bf16.gmra.mrb[0].mxu0 %v1038
    %v1858 = vpop.f32.mrb[0].mxu0
    %v1859 = vadd.f32 %v1636, %v1858
    %v1860 = vpop.f32.mrb[0].mxu0
    %v1861 = vadd.f32 %v1638, %v1860
    %v1862 = vpop.f32.mrb[0].mxu0
    %v1863 = vadd.f32 %v1640, %v1862
    %v1864 = vpop.f32.mrb[0].mxu0
    %v1865 = vadd.f32 %v1642, %v1864
    %1866 = vmatprep.mubr.bf16.mxu0 %v1043
    %1867 = vmatmul.mubr.bf16.gmra.mrb[0].mxu0 %v1042
    %v1868 = vpop.f32.mrb[0].mxu0
    %v1869 = vadd.f32 %v1646, %v1868
    %v1870 = vpop.f32.mrb[0].mxu0
    %v1871 = vadd.f32 %v1648, %v1870
    %v1872 = vpop.f32.mrb[0].mxu0
    %v1873 = vadd.f32 %v1650, %v1872
    %v1874 = vpop.f32.mrb[0].mxu0
    %v1875 = vadd.f32 %v1652, %v1874
    %1876 = vmatprep.mubr.bf16.mxu0 %v1047
    %1877 = vmatmul.mubr.bf16.gmra.mrb[0].mxu0 %v1046
    %v1878 = vpop.f32.mrb[0].mxu0
    %v1879 = vadd.f32 %v1656, %v1878
    %v1880 = vpop.f32.mrb[0].mxu0
    %v1881 = vadd.f32 %v1658, %v1880
    %v1882 = vpop.f32.mrb[0].mxu0
    %v1883 = vadd.f32 %v1660, %v1882
    %v1884 = vpop.f32.mrb[0].mxu0
    %v1885 = vadd.f32 %v1662, %v1884
    %1886 = vmatprep.mubr.bf16.mxu0 %v1051
    %1887 = vmatmul.mubr.bf16.gmra.mrb[0].mxu0 %v1050
    %v1888 = vpop.f32.mrb[0].mxu0
    %v1889 = vadd.f32 %v1666, %v1888
    %v1890 = vpop.f32.mrb[0].mxu0
    %v1891 = vadd.f32 %v1668, %v1890
    %v1892 = vpop.f32.mrb[0].mxu0
    %v1893 = vadd.f32 %v1670, %v1892
    %v1894 = vpop.f32.mrb[0].mxu0
    %v1895 = vadd.f32 %v1672, %v1894
    %1896 = vmatprep.mubr.bf16.mxu0 %v1055
    %1897 = vmatmul.mubr.bf16.gmra.mrb[0].mxu0 %v1054
    %v1898 = vpop.f32.mrb[0].mxu0
    %v1899 = vadd.f32 %v1676, %v1898
    %v1900 = vpop.f32.mrb[0].mxu0
    %v1901 = vadd.f32 %v1678, %v1900
    %v1902 = vpop.f32.mrb[0].mxu0
    %v1903 = vadd.f32 %v1680, %v1902
    %v1904 = vpop.f32.mrb[0].mxu0
    %v1905 = vadd.f32 %v1682, %v1904
    %1906 = vdwg.mxu0
    %v1907 = vmul.f32 %v1719, 0.01
    %v1908 = vmul.f32 %v1721, 0.01
    %v1909 = vmul.f32 %v1723, 0.01
    %v1910 = vmul.f32 %v1725, 0.01
    %v1911 = vmul.f32 %v1729, 0.01
    %v1912 = vmul.f32 %v1731, 0.01
    %v1913 = vmul.f32 %v1733, 0.01
    %v1914 = vmul.f32 %v1735, 0.01
    %v1915 = vmul.f32 %v1739, 0.01
    %v1916 = vmul.f32 %v1741, 0.01
    %v1917 = vmul.f32 %v1743, 0.01
    %v1918 = vmul.f32 %v1745, 0.01
    %v1919 = vmul.f32 %v1749, 0.01
    %v1920 = vmul.f32 %v1751, 0.01
    %v1921 = vmul.f32 %v1753, 0.01
    %v1922 = vmul.f32 %v1755, 0.01
    %v1923 = vmul.f32 %v1759, 0.01
    %v1924 = vmul.f32 %v1761, 0.01
    %v1925 = vmul.f32 %v1763, 0.01
    %v1926 = vmul.f32 %v1765, 0.01
    %v1927 = vmul.f32 %v1769, 0.01
    %v1928 = vmul.f32 %v1771, 0.01
    %v1929 = vmul.f32 %v1773, 0.01
    %v1930 = vmul.f32 %v1775, 0.01
    %v1931 = vmul.f32 %v1779, 0.01
    %v1932 = vmul.f32 %v1781, 0.01
    %v1933 = vmul.f32 %v1783, 0.01
    %v1934 = vmul.f32 %v1785, 0.01
    %v1935 = vmul.f32 %v1789, 0.01
    %v1936 = vmul.f32 %v1791, 0.01
    %v1937 = vmul.f32 %v1793, 0.01
    %v1938 = vmul.f32 %v1795, 0.01
    %v1939 = vmul.f32 %v1799, 0.01
    %v1940 = vmul.f32 %v1801, 0.01
    %v1941 = vmul.f32 %v1803, 0.01
    %v1942 = vmul.f32 %v1805, 0.01
    %v1943 = vmul.f32 %v1809, 0.01
    %v1944 = vmul.f32 %v1811, 0.01
    %v1945 = vmul.f32 %v1813, 0.01
    %v1946 = vmul.f32 %v1815, 0.01
    %v1947 = vmul.f32 %v1819, 0.01
    %v1948 = vmul.f32 %v1821, 0.01
    %v1949 = vmul.f32 %v1823, 0.01
    %v1950 = vmul.f32 %v1825, 0.01
    %v1951 = vmul.f32 %v1829, 0.01
    %v1952 = vmul.f32 %v1831, 0.01
    %v1953 = vmul.f32 %v1833, 0.01
    %v1954 = vmul.f32 %v1835, 0.01
    %v1955 = vmul.f32 %v1839, 0.01
    %v1956 = vmul.f32 %v1841, 0.01
    %v1957 = vmul.f32 %v1843, 0.01
    %v1958 = vmul.f32 %v1845, 0.01
    %v1959 = vmul.f32 %v1849, 0.01
    %v1960 = vmul.f32 %v1851, 0.01
    %v1961 = vmul.f32 %v1853, 0.01
    %v1962 = vmul.f32 %v1855, 0.01
    %v1963 = vmul.f32 %v1859, 0.01
    %v1964 = vmul.f32 %v1861, 0.01
    %v1965 = vmul.f32 %v1863, 0.01
    %v1966 = vmul.f32 %v1865, 0.01
    %v1967 = vmul.f32 %v1869, 0.01
    %v1968 = vmul.f32 %v1871, 0.01
    %v1969 = vmul.f32 %v1873, 0.01
    %v1970 = vmul.f32 %v1875, 0.01
    %v1971 = vmul.f32 %v1879, 0.01
    %v1972 = vmul.f32 %v1881, 0.01
    %v1973 = vmul.f32 %v1883, 0.01
    %v1974 = vmul.f32 %v1885, 0.01
    %v1975 = vmul.f32 %v1889, 0.01
    %v1976 = vmul.f32 %v1891, 0.01
    %v1977 = vmul.f32 %v1893, 0.01
    %v1978 = vmul.f32 %v1895, 0.01
    %v1979 = vmul.f32 %v1899, 0.01
    %v1980 = vmul.f32 %v1901, 0.01
    %v1981 = vmul.f32 %v1903, 0.01
    %v1982 = vmul.f32 %v1905, 0.01
    %v1983 = vmax.f32 %v1719, %v1907
    %v1984 = vmax.f32 %v1721, %v1908
    %v1985 = vmax.f32 %v1723, %v1909
    %v1986 = vmax.f32 %v1725, %v1910
    %v1987 = vmax.f32 %v1729, %v1911
    %v1988 = vmax.f32 %v1731, %v1912
    %v1989 = vmax.f32 %v1733, %v1913
    %v1990 = vmax.f32 %v1735, %v1914
    %v1991 = vmax.f32 %v1739, %v1915
    %v1992 = vmax.f32 %v1741, %v1916
    %v1993 = vmax.f32 %v1743, %v1917
    %v1994 = vmax.f32 %v1745, %v1918
    %v1995 = vmax.f32 %v1749, %v1919
    %v1996 = vmax.f32 %v1751, %v1920
    %v1997 = vmax.f32 %v1753, %v1921
    %v1998 = vmax.f32 %v1755, %v1922
    %v1999 = vmax.f32 %v1759, %v1923
    %v2000 = vmax.f32 %v1761, %v1924
    %v2001 = vmax.f32 %v1763, %v1925
    %v2002 = vmax.f32 %v1765, %v1926
    %v2003 = vmax.f32 %v1769, %v1927
    %v2004 = vmax.f32 %v1771, %v1928
    %v2005 = vmax.f32 %v1773, %v1929
    %v2006 = vmax.f32 %v1775, %v1930
    %v2007 = vmax.f32 %v1779, %v1931
    %v2008 = vmax.f32 %v1781, %v1932
    %v2009 = vmax.f32 %v1783, %v1933
    %v2010 = vmax.f32 %v1785, %v1934
    %v2011 = vmax.f32 %v1789, %v1935
    %v2012 = vmax.f32 %v1791, %v1936
    %v2013 = vmax.f32 %v1793, %v1937
    %v2014 = vmax.f32 %v1795, %v1938
    %v2015 = vmax.f32 %v1799, %v1939
    %v2016 = vmax.f32 %v1801, %v1940
    %v2017 = vmax.f32 %v1803, %v1941
    %v2018 = vmax.f32 %v1805, %v1942
    %v2019 = vmax.f32 %v1809, %v1943
    %v2020 = vmax.f32 %v1811, %v1944
    %v2021 = vmax.f32 %v1813, %v1945
    %v2022 = vmax.f32 %v1815, %v1946
    %v2023 = vmax.f32 %v1819, %v1947
    %v2024 = vmax.f32 %v1821, %v1948
    %v2025 = vmax.f32 %v1823, %v1949
    %v2026 = vmax.f32 %v1825, %v1950
    %v2027 = vmax.f32 %v1829, %v1951
    %v2028 = vmax.f32 %v1831, %v1952
    %v2029 = vmax.f32 %v1833, %v1953
    %v2030 = vmax.f32 %v1835, %v1954
    %v2031 = vmax.f32 %v1839, %v1955
    %v2032 = vmax.f32 %v1841, %v1956
    %v2033 = vmax.f32 %v1843, %v1957
    %v2034 = vmax.f32 %v1845, %v1958
    %v2035 = vmax.f32 %v1849, %v1959
    %v2036 = vmax.f32 %v1851, %v1960
    %v2037 = vmax.f32 %v1853, %v1961
    %v2038 = vmax.f32 %v1855, %v1962
    %v2039 = vmax.f32 %v1859, %v1963
    %v2040 = vmax.f32 %v1861, %v1964
    %v2041 = vmax.f32 %v1863, %v1965
    %v2042 = vmax.f32 %v1865, %v1966
    %v2043 = vmax.f32 %v1869, %v1967
    %v2044 = vmax.f32 %v1871, %v1968
    %v2045 = vmax.f32 %v1873, %v1969
    %v2046 = vmax.f32 %v1875, %v1970
    %v2047 = vmax.f32 %v1879, %v1971
    %v2048 = vmax.f32 %v1881, %v1972
    %v2049 = vmax.f32 %v1883, %v1973
    %v2050 = vmax.f32 %v1885, %v1974
    %v2051 = vmax.f32 %v1889, %v1975
    %v2052 = vmax.f32 %v1891, %v1976
    %v2053 = vmax.f32 %v1893, %v1977
    %v2054 = vmax.f32 %v1895, %v1978
    %v2055 = vmax.f32 %v1899, %v1979
    %v2056 = vmax.f32 %v1901, %v1980
    %v2057 = vmax.f32 %v1903, %v1981
    %v2058 = vmax.f32 %v1905, %v1982
    %v2059 = vpack.c.bf16 %v1985, %v1983
    %v2060 = vpack.c.bf16 %v1986, %v1984
    %v2061 = vpack.c.bf16 %v1989, %v1987
    %v2062 = vpack.c.bf16 %v1990, %v1988
    %v2063 = vpack.c.bf16 %v1993, %v1991
    %v2064 = vpack.c.bf16 %v1994, %v1992
    %v2065 = vpack.c.bf16 %v1997, %v1995
    %v2066 = vpack.c.bf16 %v1998, %v1996
    %v2067 = vpack.c.bf16 %v2001, %v1999
    %v2068 = vpack.c.bf16 %v2002, %v2000
    %v2069 = vpack.c.bf16 %v2005, %v2003
    %v2070 = vpack.c.bf16 %v2006, %v2004
    %v2071 = vpack.c.bf16 %v2009, %v2007
    %v2072 = vpack.c.bf16 %v2010, %v2008
    %v2073 = vpack.c.bf16 %v2013, %v2011
    %v2074 = vpack.c.bf16 %v2014, %v2012
    %v2075 = vpack.c.bf16 %v2017, %v2015
    %v2076 = vpack.c.bf16 %v2018, %v2016
    %v2077 = vpack.c.bf16 %v2021, %v2019
    %v2078 = vpack.c.bf16 %v2022, %v2020
    %v2079 = vpack.c.bf16 %v2025, %v2023
    %v2080 = vpack.c.bf16 %v2026, %v2024
    %v2081 = vpack.c.bf16 %v2029, %v2027
    %v2082 = vpack.c.bf16 %v2030, %v2028
    %v2083 = vpack.c.bf16 %v2033, %v2031
    %v2084 = vpack.c.bf16 %v2034, %v2032
    %v2085 = vpack.c.bf16 %v2037, %v2035
    %v2086 = vpack.c.bf16 %v2038, %v2036
    %v2087 = vpack.c.bf16 %v2041, %v2039
    %v2088 = vpack.c.bf16 %v2042, %v2040
    %v2089 = vpack.c.bf16 %v2045, %v2043
    %v2090 = vpack.c.bf16 %v2046, %v2044
    %v2091 = vpack.c.bf16 %v2049, %v2047
    %v2092 = vpack.c.bf16 %v2050, %v2048
    %v2093 = vpack.c.bf16 %v2053, %v2051
    %v2094 = vpack.c.bf16 %v2054, %v2052
    %v2095 = vpack.c.bf16 %v2057, %v2055
    %v2096 = vpack.c.bf16 %v2058, %v2056
    %v2097 = vld [vmem:[%s5] sm:$0xf]
    %v2098 = vld [vmem:[%s5 + $0x4] sm:$0xf]
    %v2099 = vld [vmem:[%s5 + $0x8] sm:$0xf]
    %v2100 = vld [vmem:[%s5 + $0xc] sm:$0xf]
    %v2101 = vld [vmem:[%s5 + $0x10] sm:$0xf]
    %v2102 = vld [vmem:[%s5 + $0x14] sm:$0xf]
    %v2103 = vld [vmem:[%s5 + $0x18] sm:$0xf]
    %v2104 = vld [vmem:[%s5 + $0x1c] sm:$0xf]
    %v2105 = vld [vmem:[%s5 + $0x20] sm:$0xf]
    %v2106 = vld [vmem:[%s5 + $0x24] sm:$0xf]
    %v2107 = vld [vmem:[%s5 + $0x28] sm:$0xf]
    %v2108 = vld [vmem:[%s5 + $0x2c] sm:$0xf]
    %v2109 = vld [vmem:[%s5 + $0x30] sm:$0xf]
    %v2110 = vld [vmem:[%s5 + $0x34] sm:$0xf]
    %v2111 = vld [vmem:[%s5 + $0x38] sm:$0xf]
    %v2112 = vld [vmem:[%s5 + $0x3c] sm:$0xf]
    %v2113 = vld [vmem:[%s5 + $0x40] sm:$0xf]
    %v2114 = vld [vmem:[%s5 + $0x44] sm:$0xf]
    %v2115 = vld [vmem:[%s5 + $0x48] sm:$0xf]
    %v2116 = vld [vmem:[%s5 + $0x4c] sm:$0xf]
    %v2117 = vld [vmem:[%s5 + $0x50] sm:$0xf]
    %v2118 = vld [vmem:[%s5 + $0x54] sm:$0xf]
    %v2119 = vld [vmem:[%s5 + $0x58] sm:$0xf]
    %v2120 = vld [vmem:[%s5 + $0x5c] sm:$0xf]
    %v2121 = vld [vmem:[%s5 + $0x60] sm:$0xf]
    %v2122 = vld [vmem:[%s5 + $0x64] sm:$0xf]
    %v2123 = vld [vmem:[%s5 + $0x68] sm:$0xf]
    %v2124 = vld [vmem:[%s5 + $0x6c] sm:$0xf]
    %v2125 = vld [vmem:[%s5 + $0x70] sm:$0xf]
    %v2126 = vld [vmem:[%s5 + $0x74] sm:$0xf]
    %v2127 = vld [vmem:[%s5 + $0x78] sm:$0xf]
    %v2128 = vld [vmem:[%s5 + $0x7c] sm:$0xf]
    %v2129 = vld [vmem:[%s6] sm:$0x1]
    %v2130 = vunpack.c.l.bf16 %v2129
    %v2131 = vlaneseq
    %v2132 = vshrl.u32 %v2131, 7
    %v2133 = vsub.s32 0, %v2132
    %v2134 = vrot.slane %v2130, %v2133
    %v2167 = vunpack.c.l.b16 %v2097
    %v2168 = vunpack.c.l.b16 %v2098
    %v2169 = vunpack.c.l.b16 %v2099
    %v2170 = vunpack.c.l.b16 %v2100
    %v2171 = vunpack.c.l.b16 %v2101
    %v2172 = vunpack.c.l.b16 %v2102
    %v2173 = vunpack.c.l.b16 %v2103
    %v2174 = vunpack.c.l.b16 %v2104
    %v2175 = vunpack.c.l.b16 %v2105
    %v2176 = vunpack.c.l.b16 %v2106
    %v2177 = vunpack.c.l.b16 %v2107
    %v2178 = vunpack.c.l.b16 %v2108
    %v2179 = vunpack.c.l.b16 %v2109
    %v2180 = vunpack.c.l.b16 %v2110
    %v2181 = vunpack.c.l.b16 %v2111
    %v2182 = vunpack.c.l.b16 %v2112
    %v2183 = vunpack.c.l.b16 %v2113
    %v2184 = vunpack.c.l.b16 %v2114
    %v2185 = vunpack.c.l.b16 %v2115
    %v2186 = vunpack.c.l.b16 %v2116
    %v2187 = vunpack.c.l.b16 %v2117
    %v2188 = vunpack.c.l.b16 %v2118
    %v2189 = vunpack.c.l.b16 %v2119
    %v2190 = vunpack.c.l.b16 %v2120
    %v2191 = vunpack.c.l.b16 %v2121
    %v2192 = vunpack.c.l.b16 %v2122
    %v2193 = vunpack.c.l.b16 %v2123
    %v2194 = vunpack.c.l.b16 %v2124
    %v2195 = vunpack.c.l.b16 %v2125
    %v2196 = vunpack.c.l.b16 %v2126
    %v2197 = vunpack.c.l.b16 %v2127
    %v2198 = vunpack.c.l.b16 %v2128
    %v2199 = vpack.c.b16 %v2168, %v2167
    %v2200 = vpack.c.b16 %v2170, %v2169
    %v2201 = vpack.c.b16 %v2172, %v2171
    %v2202 = vpack.c.b16 %v2174, %v2173
    %v2203 = vpack.c.b16 %v2176, %v2175
    %v2204 = vpack.c.b16 %v2178, %v2177
    %v2205 = vpack.c.b16 %v2180, %v2179
    %v2206 = vpack.c.b16 %v2182, %v2181
    %v2207 = vpack.c.b16 %v2184, %v2183
    %v2208 = vpack.c.b16 %v2186, %v2185
    %v2209 = vpack.c.b16 %v2188, %v2187
    %v2210 = vpack.c.b16 %v2190, %v2189
    %v2211 = vpack.c.b16 %v2192, %v2191
    %v2212 = vpack.c.b16 %v2194, %v2193
    %v2213 = vpack.c.b16 %v2196, %v2195
    %v2214 = vpack.c.b16 %v2198, %v2197
    %2231 = vmatprep.subr.bf16.mxu0 0
    %2232 = vmatpush1.bf16.msra.mxu0 %v2199
    %2233 = vmatprep.subr.bf16.mxu0 0
    %2234 = vmatpush1.bf16.msra.mxu0 %v2200
    %2235 = vmatprep.subr.bf16.mxu0 0
    %2236 = vmatpush1.bf16.msra.mxu0 %v2201
    %2237 = vmatprep.subr.bf16.mxu0 0
    %2238 = vmatpush1.bf16.msra.mxu0 %v2202
    %2239 = vmatprep.subr.bf16.mxu0 0
    %2240 = vmatpush1.bf16.msra.mxu0 %v2203
    %2241 = vmatprep.subr.bf16.mxu0 0
    %2242 = vmatpush1.bf16.msra.mxu0 %v2204
    %2243 = vmatprep.subr.bf16.mxu0 0
    %2244 = vmatpush1.bf16.msra.mxu0 %v2205
    %2245 = vmatprep.subr.bf16.mxu0 0
    %2246 = vmatpush1.bf16.msra.mxu0 %v2206
    %2247 = vmatprep.subr.bf16.mxu0 0
    %2248 = vmatpush1.bf16.msra.mxu0 %v2207
    %2249 = vmatprep.subr.bf16.mxu0 0
    %2250 = vmatpush1.bf16.msra.mxu0 %v2208
    %2251 = vmatprep.subr.bf16.mxu0 0
    %2252 = vmatpush1.bf16.msra.mxu0 %v2209
    %2253 = vmatprep.subr.bf16.mxu0 0
    %2254 = vmatpush1.bf16.msra.mxu0 %v2210
    %2255 = vmatprep.subr.bf16.mxu0 0
    %2256 = vmatpush1.bf16.msra.mxu0 %v2211
    %2257 = vmatprep.subr.bf16.mxu0 0
    %2258 = vmatpush1.bf16.msra.mxu0 %v2212
    %2259 = vmatprep.subr.bf16.mxu0 0
    %2260 = vmatpush1.bf16.msra.mxu0 %v2213
    %2261 = vmatprep.subr.bf16.mxu0 0
    %2262 = vmatpush1.bf16.msra.mxu0 %v2214
    %2263 = vmatprep.mubr.bf16.mxu0 %v2060
    %2264 = vmatmul.mubr.bf16.gmra.mrb[0].mxu0 %v2059
    %v2265 = vpop.f32.mrb[0].mxu0
    %v2266 = vadd.f32 %v2134, %v2265
    %v2267 = vpop.f32.mrb[0].mxu0
    %v2268 = vpop.f32.mrb[0].mxu0
    %v2269 = vadd.f32 %v2134, %v2268
    %v2270 = vpop.f32.mrb[0].mxu0
    %2271 = vmatprep.mubr.bf16.mxu0 %v2062
    %2272 = vmatmul.mubr.bf16.gmra.mrb[0].mxu0 %v2061
    %v2273 = vpop.f32.mrb[0].mxu0
    %v2274 = vadd.f32 %v2134, %v2273
    %v2275 = vpop.f32.mrb[0].mxu0
    %v2276 = vpop.f32.mrb[0].mxu0
    %v2277 = vadd.f32 %v2134, %v2276
    %v2278 = vpop.f32.mrb[0].mxu0
    %2279 = vmatprep.mubr.bf16.mxu0 %v2064
    %2280 = vmatmul.mubr.bf16.gmra.mrb[0].mxu0 %v2063
    %v2281 = vpop.f32.mrb[0].mxu0
    %v2282 = vadd.f32 %v2134, %v2281
    %v2283 = vpop.f32.mrb[0].mxu0
    %v2284 = vpop.f32.mrb[0].mxu0
    %v2285 = vadd.f32 %v2134, %v2284
    %v2286 = vpop.f32.mrb[0].mxu0
    %2287 = vmatprep.mubr.bf16.mxu0 %v2066
    %2288 = vmatmul.mubr.bf16.gmra.mrb[0].mxu0 %v2065
    %v2289 = vpop.f32.mrb[0].mxu0
    %v2290 = vadd.f32 %v2134, %v2289
    %v2291 = vpop.f32.mrb[0].mxu0
    %v2292 = vpop.f32.mrb[0].mxu0
    %v2293 = vadd.f32 %v2134, %v2292
    %v2294 = vpop.f32.mrb[0].mxu0
    %2295 = vmatprep.mubr.bf16.mxu0 %v2068
    %2296 = vmatmul.mubr.bf16.gmra.mrb[0].mxu0 %v2067
    %v2297 = vpop.f32.mrb[0].mxu0
    %v2298 = vadd.f32 %v2134, %v2297
    %v2299 = vpop.f32.mrb[0].mxu0
    %v2300 = vpop.f32.mrb[0].mxu0
    %v2301 = vadd.f32 %v2134, %v2300
    %v2302 = vpop.f32.mrb[0].mxu0
    %2303 = vmatprep.mubr.bf16.mxu0 %v2070
    %2304 = vmatmul.mubr.bf16.gmra.mrb[0].mxu0 %v2069
    %v2305 = vpop.f32.mrb[0].mxu0
    %v2306 = vadd.f32 %v2134, %v2305
    %v2307 = vpop.f32.mrb[0].mxu0
    %v2308 = vpop.f32.mrb[0].mxu0
    %v2309 = vadd.f32 %v2134, %v2308
    %v2310 = vpop.f32.mrb[0].mxu0
    %2311 = vmatprep.mubr.bf16.mxu0 %v2072
    %2312 = vmatmul.mubr.bf16.gmra.mrb[0].mxu0 %v2071
    %v2313 = vpop.f32.mrb[0].mxu0
    %v2314 = vadd.f32 %v2134, %v2313
    %v2315 = vpop.f32.mrb[0].mxu0
    %v2316 = vpop.f32.mrb[0].mxu0
    %v2317 = vadd.f32 %v2134, %v2316
    %v2318 = vpop.f32.mrb[0].mxu0
    %2319 = vmatprep.mubr.bf16.mxu0 %v2074
    %2320 = vmatmul.mubr.bf16.gmra.mrb[0].mxu0 %v2073
    %v2321 = vpop.f32.mrb[0].mxu0
    %v2322 = vadd.f32 %v2134, %v2321
    %v2323 = vpop.f32.mrb[0].mxu0
    %v2324 = vpop.f32.mrb[0].mxu0
    %v2325 = vadd.f32 %v2134, %v2324
    %v2326 = vpop.f32.mrb[0].mxu0
    %2327 = vmatprep.mubr.bf16.mxu0 %v2076
    %2328 = vmatmul.mubr.bf16.gmra.mrb[0].mxu0 %v2075
    %v2329 = vpop.f32.mrb[0].mxu0
    %v2330 = vadd.f32 %v2134, %v2329
    %v2331 = vpop.f32.mrb[0].mxu0
    %v2332 = vpop.f32.mrb[0].mxu0
    %v2333 = vadd.f32 %v2134, %v2332
    %v2334 = vpop.f32.mrb[0].mxu0
    %2335 = vmatprep.mubr.bf16.mxu0 %v2078
    %2336 = vmatmul.mubr.bf16.gmra.mrb[0].mxu0 %v2077
    %v2337 = vpop.f32.mrb[0].mxu0
    %v2338 = vadd.f32 %v2134, %v2337
    %v2339 = vpop.f32.mrb[0].mxu0
    %v2340 = vpop.f32.mrb[0].mxu0
    %v2341 = vadd.f32 %v2134, %v2340
    %v2342 = vpop.f32.mrb[0].mxu0
    %2343 = vmatprep.mubr.bf16.mxu0 %v2080
    %2344 = vmatmul.mubr.bf16.gmra.mrb[0].mxu0 %v2079
    %v2345 = vpop.f32.mrb[0].mxu0
    %v2346 = vadd.f32 %v2134, %v2345
    %v2347 = vpop.f32.mrb[0].mxu0
    %v2348 = vpop.f32.mrb[0].mxu0
    %v2349 = vadd.f32 %v2134, %v2348
    %v2350 = vpop.f32.mrb[0].mxu0
    %2351 = vmatprep.mubr.bf16.mxu0 %v2082
    %2352 = vmatmul.mubr.bf16.gmra.mrb[0].mxu0 %v2081
    %v2353 = vpop.f32.mrb[0].mxu0
    %v2354 = vadd.f32 %v2134, %v2353
    %v2355 = vpop.f32.mrb[0].mxu0
    %v2356 = vpop.f32.mrb[0].mxu0
    %v2357 = vadd.f32 %v2134, %v2356
    %v2358 = vpop.f32.mrb[0].mxu0
    %2359 = vmatprep.mubr.bf16.mxu0 %v2084
    %2360 = vmatmul.mubr.bf16.gmra.mrb[0].mxu0 %v2083
    %v2361 = vpop.f32.mrb[0].mxu0
    %v2362 = vadd.f32 %v2134, %v2361
    %v2363 = vpop.f32.mrb[0].mxu0
    %v2364 = vpop.f32.mrb[0].mxu0
    %v2365 = vadd.f32 %v2134, %v2364
    %v2366 = vpop.f32.mrb[0].mxu0
    %2367 = vmatprep.mubr.bf16.mxu0 %v2086
    %2368 = vmatmul.mubr.bf16.gmra.mrb[0].mxu0 %v2085
    %v2369 = vpop.f32.mrb[0].mxu0
    %v2370 = vadd.f32 %v2134, %v2369
    %v2371 = vpop.f32.mrb[0].mxu0
    %v2372 = vpop.f32.mrb[0].mxu0
    %v2373 = vadd.f32 %v2134, %v2372
    %v2374 = vpop.f32.mrb[0].mxu0
    %2375 = vmatprep.mubr.bf16.mxu0 %v2088
    %2376 = vmatmul.mubr.bf16.gmra.mrb[0].mxu0 %v2087
    %v2377 = vpop.f32.mrb[0].mxu0
    %v2378 = vadd.f32 %v2134, %v2377
    %v2379 = vpop.f32.mrb[0].mxu0
    %v2380 = vpop.f32.mrb[0].mxu0
    %v2381 = vadd.f32 %v2134, %v2380
    %v2382 = vpop.f32.mrb[0].mxu0
    %2383 = vmatprep.mubr.bf16.mxu0 %v2090
    %2384 = vmatmul.mubr.bf16.gmra.mrb[0].mxu0 %v2089
    %v2385 = vpop.f32.mrb[0].mxu0
    %v2386 = vadd.f32 %v2134, %v2385
    %v2387 = vpop.f32.mrb[0].mxu0
    %v2388 = vpop.f32.mrb[0].mxu0
    %v2389 = vadd.f32 %v2134, %v2388
    %v2390 = vpop.f32.mrb[0].mxu0
    %2391 = vmatprep.mubr.bf16.mxu0 %v2092
    %2392 = vmatmul.mubr.bf16.gmra.mrb[0].mxu0 %v2091
    %v2393 = vpop.f32.mrb[0].mxu0
    %v2394 = vadd.f32 %v2134, %v2393
    %v2395 = vpop.f32.mrb[0].mxu0
    %v2396 = vpop.f32.mrb[0].mxu0
    %v2397 = vadd.f32 %v2134, %v2396
    %v2398 = vpop.f32.mrb[0].mxu0
    %2399 = vmatprep.mubr.bf16.mxu0 %v2094
    %2400 = vmatmul.mubr.bf16.gmra.mrb[0].mxu0 %v2093
    %v2401 = vpop.f32.mrb[0].mxu0
    %v2402 = vadd.f32 %v2134, %v2401
    %v2403 = vpop.f32.mrb[0].mxu0
    %v2404 = vpop.f32.mrb[0].mxu0
    %v2405 = vadd.f32 %v2134, %v2404
    %v2406 = vpop.f32.mrb[0].mxu0
    %2407 = vmatprep.mubr.bf16.mxu0 %v2096
    %2408 = vmatmul.mubr.bf16.gmra.mrb[0].mxu0 %v2095
    %v2409 = vpop.f32.mrb[0].mxu0
    %v2410 = vadd.f32 %v2134, %v2409
    %v2411 = vpop.f32.mrb[0].mxu0
    %v2412 = vpop.f32.mrb[0].mxu0
    %v2413 = vadd.f32 %v2134, %v2412
    %v2414 = vpop.f32.mrb[0].mxu0
    %2415 = vdwg.mxu0
    %v2416 = vmul.f32 %v2266, 0.01
    %v2417 = vmul.f32 %v2269, 0.01
    %v2418 = vmul.f32 %v2274, 0.01
    %v2419 = vmul.f32 %v2277, 0.01
    %v2420 = vmul.f32 %v2282, 0.01
    %v2421 = vmul.f32 %v2285, 0.01
    %v2422 = vmul.f32 %v2290, 0.01
    %v2423 = vmul.f32 %v2293, 0.01
    %v2424 = vmul.f32 %v2298, 0.01
    %v2425 = vmul.f32 %v2301, 0.01
    %v2426 = vmul.f32 %v2306, 0.01
    %v2427 = vmul.f32 %v2309, 0.01
    %v2428 = vmul.f32 %v2314, 0.01
    %v2429 = vmul.f32 %v2317, 0.01
    %v2430 = vmul.f32 %v2322, 0.01
    %v2431 = vmul.f32 %v2325, 0.01
    %v2432 = vmul.f32 %v2330, 0.01
    %v2433 = vmul.f32 %v2333, 0.01
    %v2434 = vmul.f32 %v2338, 0.01
    %v2435 = vmul.f32 %v2341, 0.01
    %v2436 = vmul.f32 %v2346, 0.01
    %v2437 = vmul.f32 %v2349, 0.01
    %v2438 = vmul.f32 %v2354, 0.01
    %v2439 = vmul.f32 %v2357, 0.01
    %v2440 = vmul.f32 %v2362, 0.01
    %v2441 = vmul.f32 %v2365, 0.01
    %v2442 = vmul.f32 %v2370, 0.01
    %v2443 = vmul.f32 %v2373, 0.01
    %v2444 = vmul.f32 %v2378, 0.01
    %v2445 = vmul.f32 %v2381, 0.01
    %v2446 = vmul.f32 %v2386, 0.01
    %v2447 = vmul.f32 %v2389, 0.01
    %v2448 = vmul.f32 %v2394, 0.01
    %v2449 = vmul.f32 %v2397, 0.01
    %v2450 = vmul.f32 %v2402, 0.01
    %v2451 = vmul.f32 %v2405, 0.01
    %v2452 = vmul.f32 %v2410, 0.01
    %v2453 = vmul.f32 %v2413, 0.01
    %v2454 = vmax.f32 %v2266, %v2416
    %v2455 = vmax.f32 %v2269, %v2417
    %v2456 = vmax.f32 %v2274, %v2418
    %v2457 = vmax.f32 %v2277, %v2419
    %v2458 = vmax.f32 %v2282, %v2420
    %v2459 = vmax.f32 %v2285, %v2421
    %v2460 = vmax.f32 %v2290, %v2422
    %v2461 = vmax.f32 %v2293, %v2423
    %v2462 = vmax.f32 %v2298, %v2424
    %v2463 = vmax.f32 %v2301, %v2425
    %v2464 = vmax.f32 %v2306, %v2426
    %v2465 = vmax.f32 %v2309, %v2427
    %v2466 = vmax.f32 %v2314, %v2428
    %v2467 = vmax.f32 %v2317, %v2429
    %v2468 = vmax.f32 %v2322, %v2430
    %v2469 = vmax.f32 %v2325, %v2431
    %v2470 = vmax.f32 %v2330, %v2432
    %v2471 = vmax.f32 %v2333, %v2433
    %v2472 = vmax.f32 %v2338, %v2434
    %v2473 = vmax.f32 %v2341, %v2435
    %v2474 = vmax.f32 %v2346, %v2436
    %v2475 = vmax.f32 %v2349, %v2437
    %v2476 = vmax.f32 %v2354, %v2438
    %v2477 = vmax.f32 %v2357, %v2439
    %v2478 = vmax.f32 %v2362, %v2440
    %v2479 = vmax.f32 %v2365, %v2441
    %v2480 = vmax.f32 %v2370, %v2442
    %v2481 = vmax.f32 %v2373, %v2443
    %v2482 = vmax.f32 %v2378, %v2444
    %v2483 = vmax.f32 %v2381, %v2445
    %v2484 = vmax.f32 %v2386, %v2446
    %v2485 = vmax.f32 %v2389, %v2447
    %v2486 = vmax.f32 %v2394, %v2448
    %v2487 = vmax.f32 %v2397, %v2449
    %v2488 = vmax.f32 %v2402, %v2450
    %v2489 = vmax.f32 %v2405, %v2451
    %v2490 = vmax.f32 %v2410, %v2452
    %v2491 = vmax.f32 %v2413, %v2453
    %v2492 = vpack.c.bf16 %v2455, %v2454
    %v2493 = vpack.c.bf16 %v2457, %v2456
    %v2494 = vpack.c.bf16 %v2459, %v2458
    %v2495 = vpack.c.bf16 %v2461, %v2460
    %v2496 = vpack.c.bf16 %v2463, %v2462
    %v2497 = vpack.c.bf16 %v2465, %v2464
    %v2498 = vpack.c.bf16 %v2467, %v2466
    %v2499 = vpack.c.bf16 %v2469, %v2468
    %v2500 = vpack.c.bf16 %v2471, %v2470
    %v2501 = vpack.c.bf16 %v2473, %v2472
    %v2502 = vpack.c.bf16 %v2475, %v2474
    %v2503 = vpack.c.bf16 %v2477, %v2476
    %v2504 = vpack.c.bf16 %v2479, %v2478
    %v2505 = vpack.c.bf16 %v2481, %v2480
    %v2506 = vpack.c.bf16 %v2483, %v2482
    %v2507 = vpack.c.bf16 %v2485, %v2484
    %v2508 = vpack.c.bf16 %v2487, %v2486
    %v2509 = vpack.c.bf16 %v2489, %v2488
    %v2510 = vpack.c.bf16 %v2491, %v2490
    %v2511 = vld [vmem:[%s7] sm:$0xf]
    %v2512 = vld [vmem:[%s7 + $0x4] sm:$0xf]
    %v2513 = vld [vmem:[%s7 + $0x8] sm:$0xf]
    %v2514 = vld [vmem:[%s7 + $0xc] sm:$0xf]
    %v2515 = vld [vmem:[%s7 + $0x10] sm:$0xf]
    %v2516 = vld [vmem:[%s7 + $0x14] sm:$0xf]
    %v2517 = vld [vmem:[%s7 + $0x18] sm:$0xf]
    %v2518 = vld [vmem:[%s7 + $0x1c] sm:$0xf]
    %v2519 = vld [vmem:[%s7 + $0x20] sm:$0xf]
    %v2520 = vld [vmem:[%s7 + $0x24] sm:$0xf]
    %v2521 = vld [vmem:[%s7 + $0x28] sm:$0xf]
    %v2522 = vld [vmem:[%s7 + $0x2c] sm:$0xf]
    %v2523 = vld [vmem:[%s7 + $0x30] sm:$0xf]
    %v2524 = vld [vmem:[%s7 + $0x34] sm:$0xf]
    %v2525 = vld [vmem:[%s7 + $0x38] sm:$0xf]
    %v2526 = vld [vmem:[%s7 + $0x3c] sm:$0xf]
    %v2527 = vld [vmem:[%s8] sm:$0x1]
    %v2528 = vunpack.c.l.bf16 %v2527
    %v2529 = vlaneseq
    %v2530 = vshrl.u32 %v2529, 7
    %v2531 = vsub.s32 0, %v2530
    %v2532 = vrot.slane %v2528, %v2531
    %v2549 = vunpack.c.l.b16 %v2511
    %v2550 = vunpack.c.l.b16 %v2512
    %v2551 = vunpack.c.l.b16 %v2513
    %v2552 = vunpack.c.l.b16 %v2514
    %v2553 = vunpack.c.l.b16 %v2515
    %v2554 = vunpack.c.l.b16 %v2516
    %v2555 = vunpack.c.l.b16 %v2517
    %v2556 = vunpack.c.l.b16 %v2518
    %v2557 = vunpack.c.l.b16 %v2519
    %v2558 = vunpack.c.l.b16 %v2520
    %v2559 = vunpack.c.l.b16 %v2521
    %v2560 = vunpack.c.l.b16 %v2522
    %v2561 = vunpack.c.l.b16 %v2523
    %v2562 = vunpack.c.l.b16 %v2524
    %v2563 = vunpack.c.l.b16 %v2525
    %v2564 = vunpack.c.l.b16 %v2526
    %v2565 = vpack.c.b16 %v2550, %v2549
    %v2566 = vpack.c.b16 %v2552, %v2551
    %v2567 = vpack.c.b16 %v2554, %v2553
    %v2568 = vpack.c.b16 %v2556, %v2555
    %v2569 = vpack.c.b16 %v2558, %v2557
    %v2570 = vpack.c.b16 %v2560, %v2559
    %v2571 = vpack.c.b16 %v2562, %v2561
    %v2572 = vpack.c.b16 %v2564, %v2563
    %2581 = vmatprep.subr.bf16.mxu0 0
    %2582 = vmatpush1.bf16.msra.mxu0 %v2565
    %2583 = vmatprep.subr.bf16.mxu0 0
    %2584 = vmatpush1.bf16.msra.mxu0 %v2566
    %2585 = vmatprep.subr.bf16.mxu0 0
    %2586 = vmatpush1.bf16.msra.mxu0 %v2567
    %2587 = vmatprep.subr.bf16.mxu0 0
    %2588 = vmatpush1.bf16.msra.mxu0 %v2568
    %2589 = vmatprep.subr.bf16.mxu0 0
    %2590 = vmatpush1.bf16.msra.mxu0 %v2569
    %2591 = vmatprep.subr.bf16.mxu0 0
    %2592 = vmatpush1.bf16.msra.mxu0 %v2570
    %2593 = vmatprep.subr.bf16.mxu0 0
    %2594 = vmatpush1.bf16.msra.mxu0 %v2571
    %2595 = vmatprep.subr.bf16.mxu0 0
    %2596 = vmatpush1.bf16.msra.mxu0 %v2572
    %2597 = vmatprep.subr.bf16.mxu0 0
    %2598 = vmatpush1.bf16.msra.mxu0 0
    %2599 = vmatprep.subr.bf16.mxu0 0
    %2600 = vmatpush1.bf16.msra.mxu0 0
    %2601 = vmatprep.subr.bf16.mxu0 0
    %2602 = vmatpush1.bf16.msra.mxu0 0
    %2603 = vmatprep.subr.bf16.mxu0 0
    %2604 = vmatpush1.bf16.msra.mxu0 0
    %2605 = vmatprep.subr.bf16.mxu0 0
    %2606 = vmatpush1.bf16.msra.mxu0 0
    %2607 = vmatprep.subr.bf16.mxu0 0
    %2608 = vmatpush1.bf16.msra.mxu0 0
    %2609 = vmatprep.subr.bf16.mxu0 0
    %2610 = vmatpush1.bf16.msra.mxu0 0
    %2611 = vmatprep.subr.bf16.mxu0 0
    %2612 = vmatpush1.bf16.msra.mxu0 0
    %2613 = vmatprep.mubr.bf16.mxu0 0
    %2614 = vmatmul.mubr.bf16.gmra.mrb[0].mxu0 %v2492
    %v2615 = vpop.f32.mrb[0].mxu0
    %v2616 = vadd.f32 %v2532, %v2615
    %v2617 = vpop.f32.mrb[0].mxu0
    %v2618 = vpop.f32.mrb[0].mxu0
    %v2619 = vadd.f32 %v2532, %v2618
    %v2620 = vpop.f32.mrb[0].mxu0
    %2621 = vmatprep.mubr.bf16.mxu0 0
    %2622 = vmatmul.mubr.bf16.gmra.mrb[0].mxu0 %v2493
    %v2623 = vpop.f32.mrb[0].mxu0
    %v2624 = vadd.f32 %v2532, %v2623
    %v2625 = vpop.f32.mrb[0].mxu0
    %v2626 = vpop.f32.mrb[0].mxu0
    %v2627 = vadd.f32 %v2532, %v2626
    %v2628 = vpop.f32.mrb[0].mxu0
    %2629 = vmatprep.mubr.bf16.mxu0 0
    %2630 = vmatmul.mubr.bf16.gmra.mrb[0].mxu0 %v2494
    %v2631 = vpop.f32.mrb[0].mxu0
    %v2632 = vadd.f32 %v2532, %v2631
    %v2633 = vpop.f32.mrb[0].mxu0
    %v2634 = vpop.f32.mrb[0].mxu0
    %v2635 = vadd.f32 %v2532, %v2634
    %v2636 = vpop.f32.mrb[0].mxu0
    %2637 = vmatprep.mubr.bf16.mxu0 0
    %2638 = vmatmul.mubr.bf16.gmra.mrb[0].mxu0 %v2495
    %v2639 = vpop.f32.mrb[0].mxu0
    %v2640 = vadd.f32 %v2532, %v2639
    %v2641 = vpop.f32.mrb[0].mxu0
    %v2642 = vpop.f32.mrb[0].mxu0
    %v2643 = vadd.f32 %v2532, %v2642
    %v2644 = vpop.f32.mrb[0].mxu0
    %2645 = vmatprep.mubr.bf16.mxu0 0
    %2646 = vmatmul.mubr.bf16.gmra.mrb[0].mxu0 %v2496
    %v2647 = vpop.f32.mrb[0].mxu0
    %v2648 = vadd.f32 %v2532, %v2647
    %v2649 = vpop.f32.mrb[0].mxu0
    %v2650 = vpop.f32.mrb[0].mxu0
    %v2651 = vadd.f32 %v2532, %v2650
    %v2652 = vpop.f32.mrb[0].mxu0
    %2653 = vmatprep.mubr.bf16.mxu0 0
    %2654 = vmatmul.mubr.bf16.gmra.mrb[0].mxu0 %v2497
    %v2655 = vpop.f32.mrb[0].mxu0
    %v2656 = vadd.f32 %v2532, %v2655
    %v2657 = vpop.f32.mrb[0].mxu0
    %v2658 = vpop.f32.mrb[0].mxu0
    %v2659 = vadd.f32 %v2532, %v2658
    %v2660 = vpop.f32.mrb[0].mxu0
    %2661 = vmatprep.mubr.bf16.mxu0 0
    %2662 = vmatmul.mubr.bf16.gmra.mrb[0].mxu0 %v2498
    %v2663 = vpop.f32.mrb[0].mxu0
    %v2664 = vadd.f32 %v2532, %v2663
    %v2665 = vpop.f32.mrb[0].mxu0
    %v2666 = vpop.f32.mrb[0].mxu0
    %v2667 = vadd.f32 %v2532, %v2666
    %v2668 = vpop.f32.mrb[0].mxu0
    %2669 = vmatprep.mubr.bf16.mxu0 0
    %2670 = vmatmul.mubr.bf16.gmra.mrb[0].mxu0 %v2499
    %v2671 = vpop.f32.mrb[0].mxu0
    %v2672 = vadd.f32 %v2532, %v2671
    %v2673 = vpop.f32.mrb[0].mxu0
    %v2674 = vpop.f32.mrb[0].mxu0
    %v2675 = vadd.f32 %v2532, %v2674
    %v2676 = vpop.f32.mrb[0].mxu0
    %2677 = vmatprep.mubr.bf16.mxu0 0
    %2678 = vmatmul.mubr.bf16.gmra.mrb[0].mxu0 %v2500
    %v2679 = vpop.f32.mrb[0].mxu0
    %v2680 = vadd.f32 %v2532, %v2679
    %v2681 = vpop.f32.mrb[0].mxu0
    %v2682 = vpop.f32.mrb[0].mxu0
    %v2683 = vadd.f32 %v2532, %v2682
    %v2684 = vpop.f32.mrb[0].mxu0
    %2685 = vmatprep.mubr.bf16.mxu0 0
    %2686 = vmatmul.mubr.bf16.gmra.mrb[0].mxu0 %v2501
    %v2687 = vpop.f32.mrb[0].mxu0
    %v2688 = vadd.f32 %v2532, %v2687
    %v2689 = vpop.f32.mrb[0].mxu0
    %v2690 = vpop.f32.mrb[0].mxu0
    %v2691 = vadd.f32 %v2532, %v2690
    %v2692 = vpop.f32.mrb[0].mxu0
    %2693 = vmatprep.mubr.bf16.mxu0 0
    %2694 = vmatmul.mubr.bf16.gmra.mrb[0].mxu0 %v2502
    %v2695 = vpop.f32.mrb[0].mxu0
    %v2696 = vadd.f32 %v2532, %v2695
    %v2697 = vpop.f32.mrb[0].mxu0
    %v2698 = vpop.f32.mrb[0].mxu0
    %v2699 = vadd.f32 %v2532, %v2698
    %v2700 = vpop.f32.mrb[0].mxu0
    %2701 = vmatprep.mubr.bf16.mxu0 0
    %2702 = vmatmul.mubr.bf16.gmra.mrb[0].mxu0 %v2503
    %v2703 = vpop.f32.mrb[0].mxu0
    %v2704 = vadd.f32 %v2532, %v2703
    %v2705 = vpop.f32.mrb[0].mxu0
    %v2706 = vpop.f32.mrb[0].mxu0
    %v2707 = vadd.f32 %v2532, %v2706
    %v2708 = vpop.f32.mrb[0].mxu0
    %2709 = vmatprep.mubr.bf16.mxu0 0
    %2710 = vmatmul.mubr.bf16.gmra.mrb[0].mxu0 %v2504
    %v2711 = vpop.f32.mrb[0].mxu0
    %v2712 = vadd.f32 %v2532, %v2711
    %v2713 = vpop.f32.mrb[0].mxu0
    %v2714 = vpop.f32.mrb[0].mxu0
    %v2715 = vadd.f32 %v2532, %v2714
    %v2716 = vpop.f32.mrb[0].mxu0
    %2717 = vmatprep.mubr.bf16.mxu0 0
    %2718 = vmatmul.mubr.bf16.gmra.mrb[0].mxu0 %v2505
    %v2719 = vpop.f32.mrb[0].mxu0
    %v2720 = vadd.f32 %v2532, %v2719
    %v2721 = vpop.f32.mrb[0].mxu0
    %v2722 = vpop.f32.mrb[0].mxu0
    %v2723 = vadd.f32 %v2532, %v2722
    %v2724 = vpop.f32.mrb[0].mxu0
    %2725 = vmatprep.mubr.bf16.mxu0 0
    %2726 = vmatmul.mubr.bf16.gmra.mrb[0].mxu0 %v2506
    %v2727 = vpop.f32.mrb[0].mxu0
    %v2728 = vadd.f32 %v2532, %v2727
    %v2729 = vpop.f32.mrb[0].mxu0
    %v2730 = vpop.f32.mrb[0].mxu0
    %v2731 = vadd.f32 %v2532, %v2730
    %v2732 = vpop.f32.mrb[0].mxu0
    %2733 = vmatprep.mubr.bf16.mxu0 0
    %2734 = vmatmul.mubr.bf16.gmra.mrb[0].mxu0 %v2507
    %v2735 = vpop.f32.mrb[0].mxu0
    %v2736 = vadd.f32 %v2532, %v2735
    %v2737 = vpop.f32.mrb[0].mxu0
    %v2738 = vpop.f32.mrb[0].mxu0
    %v2739 = vadd.f32 %v2532, %v2738
    %v2740 = vpop.f32.mrb[0].mxu0
    %2741 = vmatprep.mubr.bf16.mxu0 0
    %2742 = vmatmul.mubr.bf16.gmra.mrb[0].mxu0 %v2508
    %v2743 = vpop.f32.mrb[0].mxu0
    %v2744 = vadd.f32 %v2532, %v2743
    %v2745 = vpop.f32.mrb[0].mxu0
    %v2746 = vpop.f32.mrb[0].mxu0
    %v2747 = vadd.f32 %v2532, %v2746
    %v2748 = vpop.f32.mrb[0].mxu0
    %2749 = vmatprep.mubr.bf16.mxu0 0
    %2750 = vmatmul.mubr.bf16.gmra.mrb[0].mxu0 %v2509
    %v2751 = vpop.f32.mrb[0].mxu0
    %v2752 = vadd.f32 %v2532, %v2751
    %v2753 = vpop.f32.mrb[0].mxu0
    %v2754 = vpop.f32.mrb[0].mxu0
    %v2755 = vadd.f32 %v2532, %v2754
    %v2756 = vpop.f32.mrb[0].mxu0
    %2757 = vmatprep.mubr.bf16.mxu0 0
    %2758 = vmatmul.mubr.bf16.gmra.mrb[0].mxu0 %v2510
    %v2759 = vpop.f32.mrb[0].mxu0
    %v2760 = vadd.f32 %v2532, %v2759
    %v2761 = vpop.f32.mrb[0].mxu0
    %v2762 = vpop.f32.mrb[0].mxu0
    %v2763 = vadd.f32 %v2532, %v2762
    %v2764 = vpop.f32.mrb[0].mxu0
    %2765 = vdwg.mxu0
    %v2766 = vpack.c.bf16 %v2619, %v2616
    %v2767 = vpack.c.bf16 %v2627, %v2624
    %v2768 = vpack.c.bf16 %v2635, %v2632
    %v2769 = vpack.c.bf16 %v2643, %v2640
    %v2770 = vpack.c.bf16 %v2651, %v2648
    %v2771 = vpack.c.bf16 %v2659, %v2656
    %v2772 = vpack.c.bf16 %v2667, %v2664
    %v2773 = vpack.c.bf16 %v2675, %v2672
    %v2774 = vpack.c.bf16 %v2683, %v2680
    %v2775 = vpack.c.bf16 %v2691, %v2688
    %v2776 = vpack.c.bf16 %v2699, %v2696
    %v2777 = vpack.c.bf16 %v2707, %v2704
    %v2778 = vpack.c.bf16 %v2715, %v2712
    %v2779 = vpack.c.bf16 %v2723, %v2720
    %v2780 = vpack.c.bf16 %v2731, %v2728
    %v2781 = vpack.c.bf16 %v2739, %v2736
    %v2782 = vpack.c.bf16 %v2747, %v2744
    %v2783 = vpack.c.bf16 %v2755, %v2752
    %v2784 = vpack.c.bf16 %v2763, %v2760
    %v2804 = vunpack.c.l.b16 %v2766
    %v2805 = vunpack.c.h.b16 %v2766
    %v2806 = vunpack.c.l.b16 %v2767
    %v2807 = vunpack.c.h.b16 %v2767
    %v2808 = vunpack.c.l.b16 %v2768
    %v2809 = vunpack.c.h.b16 %v2768
    %v2810 = vunpack.c.l.b16 %v2769
    %v2811 = vunpack.c.h.b16 %v2769
    %v2812 = vunpack.c.l.b16 %v2770
    %v2813 = vunpack.c.h.b16 %v2770
    %v2814 = vunpack.c.l.b16 %v2771
    %v2815 = vunpack.c.h.b16 %v2771
    %v2816 = vunpack.c.l.b16 %v2772
    %v2817 = vunpack.c.h.b16 %v2772
    %v2818 = vunpack.c.l.b16 %v2773
    %v2819 = vunpack.c.h.b16 %v2773
    %v2820 = vunpack.c.l.b16 %v2774
    %v2821 = vunpack.c.h.b16 %v2774
    %v2822 = vunpack.c.l.b16 %v2775
    %v2823 = vunpack.c.h.b16 %v2775
    %v2824 = vunpack.c.l.b16 %v2776
    %v2825 = vunpack.c.h.b16 %v2776
    %v2826 = vunpack.c.l.b16 %v2777
    %v2827 = vunpack.c.h.b16 %v2777
    %v2828 = vunpack.c.l.b16 %v2778
    %v2829 = vunpack.c.h.b16 %v2778
    %v2830 = vunpack.c.l.b16 %v2779
    %v2831 = vunpack.c.h.b16 %v2779
    %v2832 = vunpack.c.l.b16 %v2780
    %v2833 = vunpack.c.h.b16 %v2780
    %v2834 = vunpack.c.l.b16 %v2781
    %v2835 = vunpack.c.h.b16 %v2781
    %v2836 = vunpack.c.l.b16 %v2782
    %v2837 = vunpack.c.h.b16 %v2782
    %v2838 = vunpack.c.l.b16 %v2783
    %v2839 = vunpack.c.h.b16 %v2783
    %v2840 = vunpack.c.l.b16 %v2784
    %v2841 = vunpack.c.h.b16 %v2784
    %v2842 = vpack.c.b16 %v2804, %v2804
    %v2843 = vpack.c.b16 %v2805, %v2805
    %v2844 = vpack.c.b16 %v2806, %v2806
    %v2845 = vpack.c.b16 %v2807, %v2807
    %v2846 = vpack.c.b16 %v2808, %v2808
    %v2847 = vpack.c.b16 %v2809, %v2809
    %v2848 = vpack.c.b16 %v2810, %v2810
    %v2849 = vpack.c.b16 %v2811, %v2811
    %v2850 = vpack.c.b16 %v2812, %v2812
    %v2851 = vpack.c.b16 %v2813, %v2813
    %v2852 = vpack.c.b16 %v2814, %v2814
    %v2853 = vpack.c.b16 %v2815, %v2815
    %v2854 = vpack.c.b16 %v2816, %v2816
    %v2855 = vpack.c.b16 %v2817, %v2817
    %v2856 = vpack.c.b16 %v2818, %v2818
    %v2857 = vpack.c.b16 %v2819, %v2819
    %v2858 = vpack.c.b16 %v2820, %v2820
    %v2859 = vpack.c.b16 %v2821, %v2821
    %v2860 = vpack.c.b16 %v2822, %v2822
    %v2861 = vpack.c.b16 %v2823, %v2823
    %v2862 = vpack.c.b16 %v2824, %v2824
    %v2863 = vpack.c.b16 %v2825, %v2825
    %v2864 = vpack.c.b16 %v2826, %v2826
    %v2865 = vpack.c.b16 %v2827, %v2827
    %v2866 = vpack.c.b16 %v2828, %v2828
    %v2867 = vpack.c.b16 %v2829, %v2829
    %v2868 = vpack.c.b16 %v2830, %v2830
    %v2869 = vpack.c.b16 %v2831, %v2831
    %v2870 = vpack.c.b16 %v2832, %v2832
    %v2871 = vpack.c.b16 %v2833, %v2833
    %v2872 = vpack.c.b16 %v2834, %v2834
    %v2873 = vpack.c.b16 %v2835, %v2835
    %v2874 = vpack.c.b16 %v2836, %v2836
    %v2875 = vpack.c.b16 %v2837, %v2837
    %v2876 = vpack.c.b16 %v2838, %v2838
    %v2877 = vpack.c.b16 %v2839, %v2839
    %v2878 = vpack.c.b16 %v2840, %v2840
    %v2879 = vpack.c.b16 %v2841, %v2841
    %2918 = vst [vmem:[#allocation5] sm:$0xf] %v2842
    %2919 = vst [vmem:[#allocation5 + $0x4] sm:$0xf] %v2843
    %2920 = vst [vmem:[#allocation5 + $0x8] sm:$0xf] %v2844
    %2921 = vst [vmem:[#allocation5 + $0xc] sm:$0xf] %v2845
    %2922 = vst [vmem:[#allocation5 + $0x10] sm:$0xf] %v2846
    %2923 = vst [vmem:[#allocation5 + $0x14] sm:$0xf] %v2847
    %2924 = vst [vmem:[#allocation5 + $0x18] sm:$0xf] %v2848
    %2925 = vst [vmem:[#allocation5 + $0x1c] sm:$0xf] %v2849
    %2926 = vst [vmem:[#allocation5 + $0x20] sm:$0xf] %v2850
    %2927 = vst [vmem:[#allocation5 + $0x24] sm:$0xf] %v2851
    %2928 = vst [vmem:[#allocation5 + $0x28] sm:$0xf] %v2852
    %2929 = vst [vmem:[#allocation5 + $0x2c] sm:$0xf] %v2853
    %2930 = vst [vmem:[#allocation5 + $0x30] sm:$0xf] %v2854
    %2931 = vst [vmem:[#allocation5 + $0x34] sm:$0xf] %v2855
    %2932 = vst [vmem:[#allocation5 + $0x38] sm:$0xf] %v2856
    %2933 = vst [vmem:[#allocation5 + $0x3c] sm:$0xf] %v2857
    %2934 = vst [vmem:[#allocation5 + $0x40] sm:$0xf] %v2858
    %2935 = vst [vmem:[#allocation5 + $0x44] sm:$0xf] %v2859
    %2936 = vst [vmem:[#allocation5 + $0x48] sm:$0xf] %v2860
    %2937 = vst [vmem:[#allocation5 + $0x4c] sm:$0xf] %v2861
    %2938 = vst [vmem:[#allocation5 + $0x50] sm:$0xf] %v2862
    %2939 = vst [vmem:[#allocation5 + $0x54] sm:$0xf] %v2863
    %2940 = vst [vmem:[#allocation5 + $0x58] sm:$0xf] %v2864
    %2941 = vst [vmem:[#allocation5 + $0x5c] sm:$0xf] %v2865
    %2942 = vst [vmem:[#allocation5 + $0x60] sm:$0xf] %v2866
    %2943 = vst [vmem:[#allocation5 + $0x64] sm:$0xf] %v2867
    %2944 = vst [vmem:[#allocation5 + $0x68] sm:$0xf] %v2868
    %2945 = vst [vmem:[#allocation5 + $0x6c] sm:$0xf] %v2869
    %2946 = vst [vmem:[#allocation5 + $0x70] sm:$0xf] %v2870
    %2947 = vst [vmem:[#allocation5 + $0x74] sm:$0xf] %v2871
    %2948 = vst [vmem:[#allocation5 + $0x78] sm:$0xf] %v2872
    %2949 = vst [vmem:[#allocation5 + $0x7c] sm:$0xf] %v2873
    %2950 = vst [vmem:[#allocation5 + $0x80] sm:$0xf] %v2874
    %2951 = vst [vmem:[#allocation5 + $0x84] sm:$0xf] %v2875
    %2952 = vst [vmem:[#allocation5 + $0x88] sm:$0xf] %v2876
    %2953 = vst [vmem:[#allocation5 + $0x8c] sm:$0xf] %v2877
    %2954 = vst [vmem:[#allocation5 + $0x90] sm:$0xf] %v2878
    %2955 = vst [vmem:[#allocation5 + $0x94] sm:$0xf] %v2879
    // Predicated region
    $region42: #{tpu_custom_call.1} parent=1 // pred_check
      _
    $region43: #{tpu_custom_call.1} parent=1 // pred_check_branch
      %2957 = sbr.rel (0) target = $region45
    $region44: #{tpu_custom_call.1} parent=1 // pred_region
      %s2959 = ssub.s32 2432, 2432
      %2960 = vsyncadd [#allocation4], %s2959
      %s2961 = sshll.u32 [#allocation5], 4
      %s2962 = int_to_ptr.vmem [resolvable:$true] %s2961
      %2967 = dma.vmem_to_hbm [thread:$0]  %s2962, 2432, %s9, [#allocation4], 64, 64, 4
    $region45: #{tpu_custom_call.1} parent=1 // pred_fallthru
      _
    // Predicated region
    $region46: #{tpu_custom_call.1} parent=1 // pred_check
      _
    $region47: #{tpu_custom_call.1} parent=1 // pred_check_branch
      %2969 = sbr.rel (0) target = $region49
    $region48: #{tpu_custom_call.1} parent=1 // pred_region
      %2970 = dma.done [#allocation4], 2432
    $region49: #{tpu_custom_call.1} parent=1 // pred_fallthru
      _
    %2971 = vsyncpa [#allocation3], 1
    %2972 = vsyncpa [#allocation4], 1

</llo_original>
